<compile_context>
chip_gen: v7x
topology: tpu7x:2x2x1
jax: 0.10.0
libtpu: 0.0.40
codegen_flags: <defaults>
</compile_context>

<pallas_src>
import functools

import numpy as np
import jax
import jax.numpy as jnp
from jax.experimental import pallas as pl
from jax.experimental.pallas import tpu as pltpu


# MXU operand dtype for all matmuls (accumulation is always f32).
MATMUL_DTYPE = jnp.float32   # set to jnp.bfloat16 for native MXU inputs (verify accuracy)


# ----------------------- host-side separable operators -----------------------

@functools.lru_cache(maxsize=None)
def _spectral_operators(C, H, W, NB, dtype_name):
    """Block-diagonal separable spectral operators, cached per (C, H, W, NB)."""

    def dft(n):                      # F[k, h] = exp(-2*pi*i*k*h/n)  (symmetric)
        k = np.arange(n)
        return np.exp(-2j * np.pi * np.outer(k, k) / n)

    def up_ifft(n):
        # 1-D factor fusing repeat_interleave(2) with the length-2n inverse DFT:
        #   A[a, k] = exp(+2*pi*i*a*k/n) * (1 + exp(+i*pi*a/n)) / (2n), shape (2n, n)
        a = np.arange(2 * n)[:, None].astype(np.float64)
        k = np.arange(n)[None, :].astype(np.float64)
        return np.exp(2j * np.pi * a * k / n) * (1.0 + np.exp(1j * np.pi * a / n)) / (2.0 * n)

    def crop_up_rows(n):
        # output index a in [0, 2n) -> row of the 2n-point inverse transform that
        # survives the quadrant crop followed by the nearest 2x upsample.
        i = np.arange(2 * n) // 2
        return np.where(i < n // 2, i, i + n)

    DH, DW = dft(H), dft(W)
    AH = up_ifft(H)[crop_up_rows(H), :]            # (2H, H)  left inverse op (H axis)
    AWT = up_ifft(W)[crop_up_rows(W), :].T         # (W, 2W)  right inverse op (W axis)

    i_c, i_nb = np.eye(C), np.eye(NB)

    # forward W-axis (right):  x @ [bd_C(DWr) | bd_C(DWi)]  -> [Tr | Ti]
    rw1 = np.concatenate([np.kron(i_c, DW.real), np.kron(i_c, DW.imag)], axis=1)
    # forward H-axis (left), block-diagonal over the packed batch
    bdhr = np.kron(i_nb, DH.real)
    bdhi = np.kron(i_nb, DH.imag)
    # inverse W-axis (right):  [Zr | Zi] @ [[bd(AWr), bd(AWi)], [-bd(AWi), bd(AWr)]]
    bawr, bawi = np.kron(i_c, AWT.real), np.kron(i_c, AWT.imag)
    rawc = np.block([[bawr, bawi], [-bawi, bawr]])
    # inverse H-axis (left), block-diagonal over the packed batch
    bahr = np.kron(i_nb, AH.real)
    bahi = np.kron(i_nb, AH.imag)

    dt = np.dtype(dtype_name)
    return tuple(jnp.asarray(a.astype(np.float32), dt)
                 for a in (rw1, bdhr, bdhi, rawc, bahr, bahi))


def _mix_operators(params, W):
    """1x1-conv channel mixes as lane-packed right matmul operators + bias rows."""
    f32 = jnp.float32
    i_w = jnp.eye(W, dtype=f32)
    i_2w = jnp.eye(2 * W, dtype=f32)

    def cmat(w, eye):                # (C,C) conv weight -> right operator over (c, w) lanes
        return jnp.kron(jnp.asarray(w, f32).T, eye)

    def crow(b, rep):                # bias broadcast along each channel's lane block
        return jnp.repeat(jnp.asarray(b, f32), rep)[None, :]

    def blkdiag2(a, b):
        top = jnp.concatenate([a, jnp.zeros((a.shape[0], b.shape[1]), a.dtype)], axis=1)
        bot = jnp.concatenate([jnp.zeros((b.shape[0], a.shape[1]), b.dtype), b], axis=1)
        return jnp.concatenate([top, bot], axis=0)

    # amp and pha mixes fused into one block-diagonal operator over the
    # lane-stacked [mag | pha] slab (doubles lane fill, halves matmul launches).
    cm1 = blkdiag2(cmat(params["w1a"], i_w), cmat(params["w1p"], i_w))
    cm2 = blkdiag2(cmat(params["w2a"], i_w), cmat(params["w2p"], i_w))
    mpost = cmat(params["wpost"], i_2w)
    cb1 = jnp.concatenate([crow(params["b1a"], W), crow(params["b1p"], W)], axis=1)
    cb2 = jnp.concatenate([crow(params["b2a"], W), crow(params["b2p"], W)], axis=1)
    bpost = crow(params["bpost"], 2 * W)

    md = MATMUL_DTYPE
    return (cm1.astype(md), cm2.astype(md), mpost.astype(md)), (cb1, cb2, bpost)


def _choose_nb(N, H):
    """Samples per grid step: amortize per-step overhead while keeping >= 2 grid
    steps (v7x has two TensorCores) and staying small vs. every gen's VMEM."""
    target = max(1, 256 // max(H, 1))          # ~256 sublane rows of work per step
    best = 1
    for nb in range(1, N + 1):
        if N % nb:
            continue
        if nb > target:
            break
        if N // nb >= 2 or N == 1:
            best = nb
    return best


# ----------------------------------- kernel ----------------------------------

def _freup_kernel(x_ref,
                  rw1_ref, bdhr_ref, bdhi_ref, rawc_ref, bahr_ref, bahi_ref,
                  cm1_ref, cm2_ref, mpost_ref,
                  cb1_ref, cb2_ref, bpost_ref,
                  out_ref):
    f32 = jnp.float32
    NB, H, CW = x_ref.shape                    # lanes packed as (channel, w)
    C2W = 2 * CW                               # output lane width: (channel, 2w)
    md = rw1_ref.dtype                         # MXU operand dtype

    def mm(a, b):
        return jnp.dot(a.astype(md), b.astype(md), preferred_element_type=f32)

    def swap_neg(v):                           # [A | B] -> [-B | A]  ("multiply by i")
        half = v.shape[-1] // 2
        return jnp.concatenate([-v[:, half:], v[:, :half]], axis=1)

    x = x_ref[...].reshape(NB * H, CW)         # (NB*H, C*W)

    # ---- fft2: separable DFT, re/im stacked along lanes ----------------------
    t = mm(x, rw1_ref[...])                                     # (R, 2CW)  [Tr | Ti]
    f = mm(bdhr_ref[...], t) + mm(bdhi_ref[...], swap_neg(t))   # (R, 2CW)  [Fr | Fi]

    fr, fi = f[:, :CW], f[:, CW:]
    mag = jnp.sqrt(fr * fr + fi * fi)          # torch.abs(fft2(x))
    pha = jnp.arctan2(fi, fr)                  # torch.angle(fft2(x))

    # ---- amp_fuse / pha_fuse: fused 1x1-conv mixes as block-diag matmuls -----
    mp = jnp.concatenate([mag, pha], axis=1)   # (R, 2CW)  [mag | pha]
    hmid = mm(mp, cm1_ref[...]) + cb1_ref[...]
    hmid = jnp.where(hmid >= 0, hmid, 0.1 * hmid)               # LeakyReLU(0.1)
    mp = mm(hmid, cm2_ref[...]) + cb2_ref[...]
    Mag, Pha = mp[:, :CW], mp[:, CW:]

    zr = Mag * jnp.cos(Pha)
    zi = Mag * jnp.sin(Pha)
    z = jnp.concatenate([zr, zi], axis=1)      # (R, 2CW)  [Zr | Zi]

    # ---- repeat_interleave(2,2/3) + ifft2 + quadrant crop + nearest 2x up ----
    #      (all folded into the separable AW (right) / AH (left) operators)
    p = mm(z, rawc_ref[...])                                    # (R, 2*C2W)  [Pr | Pi]
    o = mm(bahr_ref[...], p) + mm(bahi_ref[...], swap_neg(p))   # (NB*2H, 2*C2W)

    vr, vi = o[:, :C2W], o[:, C2W:]
    oabs = jnp.sqrt(vr * vr + vi * vi)         # torch.abs(ifft2(...)) after crop+up

    # ---- post 1x1 conv; single lane-dense (NB, 2H, C*2W) store ---------------
    res = mm(oabs, mpost_ref[...]) + bpost_ref[...]
    out_ref[...] = res.reshape(NB, 2 * H, C2W).astype(out_ref.dtype)


# ----------------------------------- wrapper ----------------------------------

@jax.jit
def freup_areadinterpolation(x, params):
    N, C, H, W = x.shape
    assert H % 2 == 0 and W % 2 == 0, "quadrant crop assumes even H and W"

    NB = _choose_nb(N, H)
    CW, C2W = C * W, C * 2 * W

    ops = _spectral_operators(C, H, W, NB, np.dtype(MATMUL_DTYPE).name)
    mats, biases = _mix_operators(params, W)

    # (N, C, H, W) -> (N, H, C*W): channel packed into the lane dimension.
    x_flat = jnp.transpose(x.astype(jnp.float32), (0, 2, 1, 3)).reshape(N, H, CW)

    def const_spec(a):
        zeros = (0,) * a.ndim
        return pl.BlockSpec(a.shape, lambda n: zeros)   # constant index_map: no re-fetch

    out_flat = pl.pallas_call(
        _freup_kernel,
        out_shape=jax.ShapeDtypeStruct((N, 2 * H, C2W), jnp.float32),
        grid=(N // NB,),
        in_specs=([pl.BlockSpec((NB, H, CW), lambda n: (n, 0, 0))]
                  + [const_spec(a) for a in ops]
                  + [const_spec(a) for a in mats]
                  + [const_spec(a) for a in biases]),
        out_specs=pl.BlockSpec((NB, 2 * H, C2W), lambda n: (n, 0, 0)),
        compiler_params=pltpu.CompilerParams(
            dimension_semantics=("parallel",)),
    )(x_flat, *ops, *mats, *biases)

    # (N, 2H, C*2W) -> (N, C, 2H, 2W)
    return jnp.transpose(out_flat.reshape(N, 2 * H, C, 2 * W), (0, 2, 1, 3))


def init_params(key, C):
    # Synthetic parameters with Conv2d(C, C, 1)-shaped weights/biases.
    ks = jax.random.split(key, 10)
    bound = 1.0 / np.sqrt(C)

    def w(k):
        return jax.random.uniform(k, (C, C), jnp.float32, -bound, bound)

    def b(k):
        return jax.random.uniform(k, (C,), jnp.float32, -bound, bound)

    return {"w1a": w(ks[0]), "b1a": b(ks[1]),
            "w2a": w(ks[2]), "b2a": b(ks[3]),
            "w1p": w(ks[4]), "b1p": b(ks[5]),
            "w2p": w(ks[6]), "b2p": b(ks[7]),
            "wpost": w(ks[8]), "bpost": b(ks[9])}


# ------------------------ float64 numpy reference (host) ----------------------

def _reference_numpy(x, params):
    x = np.asarray(x, np.float64)
    p = {k: np.asarray(v, np.float64) for k, v in params.items()}
    N, C, H, W = x.shape

    def conv(v, wt, b):
        return np.einsum('oc,nchw->nohw', wt, v) + b[None, :, None, None]

    def fuse(v, w1, b1, w2, b2):
        h = conv(v, w1, b1)
        h = np.where(h >= 0, h, 0.1 * h)
        return conv(h, w2, b2)

    F = np.fft.fft2(x)
    Mag = fuse(np.abs(F), p["w1a"], p["b1a"], p["w2a"], p["b2a"])
    Pha = fuse(np.angle(F), p["w1p"], p["b1p"], p["w2p"], p["b2p"])
    Mag2 = Mag.repeat(2, axis=2).repeat(2, axis=3)
    Pha2 = Pha.repeat(2, axis=2).repeat(2, axis=3)
    out = np.abs(np.fft.ifft2(Mag2 * np.cos(Pha2) + 1j * Mag2 * np.sin(Pha2)))

    crop = np.zeros_like(x)
    crop[:, :, :H // 2, :W // 2] = out[:, :, :H // 2, :W // 2]
    crop[:, :, H // 2:, :W // 2] = out[:, :, 3 * H // 2:, :W // 2]
    crop[:, :, :H // 2, W // 2:] = out[:, :, :H // 2, 3 * W // 2:]
    crop[:, :, H // 2:, W // 2:] = out[:, :, 3 * H // 2:, 3 * W // 2:]
    up = crop.repeat(2, axis=2).repeat(2, axis=3)
    return conv(up, p["wpost"], p["bpost"])


if __name__ == "__main__":
    key = jax.random.PRNGKey(0)
    kx, kp = jax.random.split(key)

    N, C, H, W = 2, 4, 16, 16
    x = jax.random.normal(kx, (N, C, H, W), jnp.float32)
    params = init_params(kp, C)

    out = jax.block_until_ready(freup_areadinterpolation(x, params))

    assert out.shape == (N, C, 2 * H, 2 * W)
    assert bool(jnp.all(jnp.isfinite(out)))

    ref = _reference_numpy(np.asarray(x), {k: np.asarray(v) for k, v in params.items()})
    err = float(np.max(np.abs(np.asarray(out, np.float64) - ref)) /
                (np.max(np.abs(ref)) + 1e-6))
    # f32 MXU path typically lands ~1e-5..1e-4; the bound below is kept
    # conservative to stay robust to the compiler's f32 contraction strategy
    # across TPU generations, yet 2.5x tighter than the previous 5e-2.
    assert err < 2e-2, f"mismatch vs reference: normalized max err {err}"

    print("KERNEL_OK")
</pallas_src>

<mosaic_0001>
module attributes {stable_mosaic.version = 11 : i64} {
  func.func @_freup_kernel(%arg0: i32, %arg1: memref<1x16x64xf32, #tpu.memory_space<vmem>>, %arg2: memref<64x128xf32, #tpu.memory_space<vmem>>, %arg3: memref<16x16xf32, #tpu.memory_space<vmem>>, %arg4: memref<16x16xf32, #tpu.memory_space<vmem>>, %arg5: memref<128x256xf32, #tpu.memory_space<vmem>>, %arg6: memref<32x16xf32, #tpu.memory_space<vmem>>, %arg7: memref<32x16xf32, #tpu.memory_space<vmem>>, %arg8: memref<128x128xf32, #tpu.memory_space<vmem>>, %arg9: memref<128x128xf32, #tpu.memory_space<vmem>>, %arg10: memref<128x128xf32, #tpu.memory_space<vmem>>, %arg11: memref<1x128xf32, #tpu.memory_space<vmem>>, %arg12: memref<1x128xf32, #tpu.memory_space<vmem>>, %arg13: memref<1x128xf32, #tpu.memory_space<vmem>>, %arg14: memref<1x32x128xf32, #tpu.memory_space<vmem>>) attributes {dimension_semantics = [#tpu.dimension_semantics<parallel>], iteration_bounds = array<i64: 2>, scalar_prefetch = 0 : i64, scratch_operands = 0 : i64, tpu.core_type = #tpu.core_type<tc>, window_params = [{transform_indices = @transform_0, window_bounds = array<i64: 1, 16, 64>}, {pipeline_mode = #tpu.pipeline_mode<synchronous>, transform_indices = @transform_1, window_bounds = array<i64: 64, 128>}, {pipeline_mode = #tpu.pipeline_mode<synchronous>, transform_indices = @transform_2, window_bounds = array<i64: 16, 16>}, {pipeline_mode = #tpu.pipeline_mode<synchronous>, transform_indices = @transform_3, window_bounds = array<i64: 16, 16>}, {pipeline_mode = #tpu.pipeline_mode<synchronous>, transform_indices = @transform_4, window_bounds = array<i64: 128, 256>}, {pipeline_mode = #tpu.pipeline_mode<synchronous>, transform_indices = @transform_5, window_bounds = array<i64: 32, 16>}, {pipeline_mode = #tpu.pipeline_mode<synchronous>, transform_indices = @transform_6, window_bounds = array<i64: 32, 16>}, {pipeline_mode = #tpu.pipeline_mode<synchronous>, transform_indices = @transform_7, window_bounds = array<i64: 128, 128>}, {pipeline_mode = #tpu.pipeline_mode<synchronous>, transform_indices = @transform_8, window_bounds = array<i64: 128, 128>}, {pipeline_mode = #tpu.pipeline_mode<synchronous>, transform_indices = @transform_9, window_bounds = array<i64: 128, 128>}, {pipeline_mode = #tpu.pipeline_mode<synchronous>, transform_indices = @transform_10, window_bounds = array<i64: 1, 128>}, {pipeline_mode = #tpu.pipeline_mode<synchronous>, transform_indices = @transform_11, window_bounds = array<i64: 1, 128>}, {pipeline_mode = #tpu.pipeline_mode<synchronous>, transform_indices = @transform_12, window_bounds = array<i64: 1, 128>}, {transform_indices = @transform_13, window_bounds = array<i64: 1, 32, 128>}]} {
    %c0 = arith.constant 0 : index
    %c0_0 = arith.constant 0 : index
    %c0_1 = arith.constant 0 : index
    %0 = vector.load %arg1[%c0, %c0_0, %c0_1] : memref<1x16x64xf32, #tpu.memory_space<vmem>>, vector<1x16x64xf32>
    %1 = vector.shape_cast %0 : vector<1x16x64xf32> to vector<16x64xf32>
    %c0_2 = arith.constant 0 : index
    %c0_3 = arith.constant 0 : index
    %2 = vector.load %arg2[%c0_2, %c0_3] : memref<64x128xf32, #tpu.memory_space<vmem>>, vector<64x128xf32>
    %cst = arith.constant dense<0.000000e+00> : vector<16x128xf32>
    %3 = tpu.matmul %1, %2, %cst {dimension_numbers = #tpu.dot_dimension_numbers<[1], [0], [0], [1], [0, 0, 1, 1], [], []>} : vector<16x64xf32>, vector<64x128xf32>, vector<16x128xf32> -> vector<16x128xf32>
    %c0_4 = arith.constant 0 : index
    %c0_5 = arith.constant 0 : index
    %4 = vector.load %arg3[%c0_4, %c0_5] : memref<16x16xf32, #tpu.memory_space<vmem>>, vector<16x16xf32>
    %cst_6 = arith.constant dense<0.000000e+00> : vector<16x128xf32>
    %5 = tpu.matmul %4, %3, %cst_6 {dimension_numbers = #tpu.dot_dimension_numbers<[1], [0], [0], [1], [0, 0, 1, 1], [], []>} : vector<16x16xf32>, vector<16x128xf32>, vector<16x128xf32> -> vector<16x128xf32>
    %c0_7 = arith.constant 0 : index
    %c0_8 = arith.constant 0 : index
    %6 = vector.load %arg4[%c0_7, %c0_8] : memref<16x16xf32, #tpu.memory_space<vmem>>, vector<16x16xf32>
    %7 = vector.extract_strided_slice %3 {offsets = [0, 64], sizes = [16, 64], strides = [1, 1]} : vector<16x128xf32> to vector<16x64xf32>
    %cst_9 = arith.constant 0.000000e+00 : f32
    %8 = vector.broadcast %cst_9 : f32 to vector<16x64xf32>
    %9 = arith.subf %8, %7 : vector<16x64xf32>
    %10 = vector.extract_strided_slice %3 {offsets = [0, 0], sizes = [16, 64], strides = [1, 1]} : vector<16x128xf32> to vector<16x64xf32>
    %11 = tpu.concatenate %9, %10 in 1 : vector<16x64xf32>, vector<16x64xf32> -> vector<16x128xf32>
    %cst_10 = arith.constant dense<0.000000e+00> : vector<16x128xf32>
    %12 = tpu.matmul %6, %11, %cst_10 {dimension_numbers = #tpu.dot_dimension_numbers<[1], [0], [0], [1], [0, 0, 1, 1], [], []>} : vector<16x16xf32>, vector<16x128xf32>, vector<16x128xf32> -> vector<16x128xf32>
    %13 = arith.addf %5, %12 : vector<16x128xf32>
    %14 = vector.extract_strided_slice %13 {offsets = [0, 0], sizes = [16, 64], strides = [1, 1]} : vector<16x128xf32> to vector<16x64xf32>
    %15 = vector.extract_strided_slice %13 {offsets = [0, 64], sizes = [16, 64], strides = [1, 1]} : vector<16x128xf32> to vector<16x64xf32>
    %16 = arith.mulf %14, %14 : vector<16x64xf32>
    %17 = arith.mulf %15, %15 : vector<16x64xf32>
    %18 = arith.addf %16, %17 : vector<16x64xf32>
    %19 = math.sqrt %18 : vector<16x64xf32>
    %20 = math.atan2 %15, %14 : vector<16x64xf32>
    %21 = tpu.concatenate %19, %20 in 1 : vector<16x64xf32>, vector<16x64xf32> -> vector<16x128xf32>
    %c0_11 = arith.constant 0 : index
    %c0_12 = arith.constant 0 : index
    %22 = vector.load %arg8[%c0_11, %c0_12] : memref<128x128xf32, #tpu.memory_space<vmem>>, vector<128x128xf32>
    %cst_13 = arith.constant dense<0.000000e+00> : vector<16x128xf32>
    %23 = tpu.matmul %21, %22, %cst_13 {dimension_numbers = #tpu.dot_dimension_numbers<[1], [0], [0], [1], [0, 0, 1, 1], [], []>} : vector<16x128xf32>, vector<128x128xf32>, vector<16x128xf32> -> vector<16x128xf32>
    %c0_14 = arith.constant 0 : index
    %c0_15 = arith.constant 0 : index
    %24 = vector.load %arg11[%c0_14, %c0_15] : memref<1x128xf32, #tpu.memory_space<vmem>>, vector<1x128xf32>
    %25 = vector.broadcast %24 : vector<1x128xf32> to vector<16x128xf32>
    %26 = arith.addf %23, %25 : vector<16x128xf32>
    %cst_16 = arith.constant 0.000000e+00 : f32
    %27 = vector.broadcast %cst_16 : f32 to vector<16x128xf32>
    %28 = arith.cmpf oge, %26, %27 : vector<16x128xf32>
    %cst_17 = arith.constant 1.000000e-01 : f32
    %29 = vector.broadcast %cst_17 : f32 to vector<16x128xf32>
    %30 = arith.mulf %29, %26 : vector<16x128xf32>
    %31 = arith.select %28, %26, %30 : vector<16x128xi1>, vector<16x128xf32>
    %c0_18 = arith.constant 0 : index
    %c0_19 = arith.constant 0 : index
    %32 = vector.load %arg9[%c0_18, %c0_19] : memref<128x128xf32, #tpu.memory_space<vmem>>, vector<128x128xf32>
    %cst_20 = arith.constant dense<0.000000e+00> : vector<16x128xf32>
    %33 = tpu.matmul %31, %32, %cst_20 {dimension_numbers = #tpu.dot_dimension_numbers<[1], [0], [0], [1], [0, 0, 1, 1], [], []>} : vector<16x128xf32>, vector<128x128xf32>, vector<16x128xf32> -> vector<16x128xf32>
    %c0_21 = arith.constant 0 : index
    %c0_22 = arith.constant 0 : index
    %34 = vector.load %arg12[%c0_21, %c0_22] : memref<1x128xf32, #tpu.memory_space<vmem>>, vector<1x128xf32>
    %35 = vector.broadcast %34 : vector<1x128xf32> to vector<16x128xf32>
    %36 = arith.addf %33, %35 : vector<16x128xf32>
    %37 = vector.extract_strided_slice %36 {offsets = [0, 0], sizes = [16, 64], strides = [1, 1]} : vector<16x128xf32> to vector<16x64xf32>
    %38 = vector.extract_strided_slice %36 {offsets = [0, 64], sizes = [16, 64], strides = [1, 1]} : vector<16x128xf32> to vector<16x64xf32>
    %39 = math.cos %38 : vector<16x64xf32>
    %40 = arith.mulf %37, %39 : vector<16x64xf32>
    %41 = math.sin %38 : vector<16x64xf32>
    %42 = arith.mulf %37, %41 : vector<16x64xf32>
    %43 = tpu.concatenate %40, %42 in 1 : vector<16x64xf32>, vector<16x64xf32> -> vector<16x128xf32>
    %c0_23 = arith.constant 0 : index
    %c0_24 = arith.constant 0 : index
    %44 = vector.load %arg5[%c0_23, %c0_24] : memref<128x256xf32, #tpu.memory_space<vmem>>, vector<128x256xf32>
    %cst_25 = arith.constant dense<0.000000e+00> : vector<16x256xf32>
    %45 = tpu.matmul %43, %44, %cst_25 {dimension_numbers = #tpu.dot_dimension_numbers<[1], [0], [0], [1], [0, 0, 1, 1], [], []>} : vector<16x128xf32>, vector<128x256xf32>, vector<16x256xf32> -> vector<16x256xf32>
    %c0_26 = arith.constant 0 : index
    %c0_27 = arith.constant 0 : index
    %46 = vector.load %arg6[%c0_26, %c0_27] : memref<32x16xf32, #tpu.memory_space<vmem>>, vector<32x16xf32>
    %cst_28 = arith.constant dense<0.000000e+00> : vector<32x256xf32>
    %47 = tpu.matmul %46, %45, %cst_28 {dimension_numbers = #tpu.dot_dimension_numbers<[1], [0], [0], [1], [0, 0, 1, 1], [], []>} : vector<32x16xf32>, vector<16x256xf32>, vector<32x256xf32> -> vector<32x256xf32>
    %c0_29 = arith.constant 0 : index
    %c0_30 = arith.constant 0 : index
    %48 = vector.load %arg7[%c0_29, %c0_30] : memref<32x16xf32, #tpu.memory_space<vmem>>, vector<32x16xf32>
    %49 = vector.extract_strided_slice %45 {offsets = [0, 128], sizes = [16, 128], strides = [1, 1]} : vector<16x256xf32> to vector<16x128xf32>
    %cst_31 = arith.constant 0.000000e+00 : f32
    %50 = vector.broadcast %cst_31 : f32 to vector<16x128xf32>
    %51 = arith.subf %50, %49 : vector<16x128xf32>
    %52 = vector.extract_strided_slice %45 {offsets = [0, 0], sizes = [16, 128], strides = [1, 1]} : vector<16x256xf32> to vector<16x128xf32>
    %53 = tpu.concatenate %51, %52 in 1 : vector<16x128xf32>, vector<16x128xf32> -> vector<16x256xf32>
    %cst_32 = arith.constant dense<0.000000e+00> : vector<32x256xf32>
    %54 = tpu.matmul %48, %53, %cst_32 {dimension_numbers = #tpu.dot_dimension_numbers<[1], [0], [0], [1], [0, 0, 1, 1], [], []>} : vector<32x16xf32>, vector<16x256xf32>, vector<32x256xf32> -> vector<32x256xf32>
    %55 = arith.addf %47, %54 : vector<32x256xf32>
    %56 = vector.extract_strided_slice %55 {offsets = [0, 0], sizes = [32, 128], strides = [1, 1]} : vector<32x256xf32> to vector<32x128xf32>
    %57 = vector.extract_strided_slice %55 {offsets = [0, 128], sizes = [32, 128], strides = [1, 1]} : vector<32x256xf32> to vector<32x128xf32>
    %58 = arith.mulf %56, %56 : vector<32x128xf32>
    %59 = arith.mulf %57, %57 : vector<32x128xf32>
    %60 = arith.addf %58, %59 : vector<32x128xf32>
    %61 = math.sqrt %60 : vector<32x128xf32>
    %c0_33 = arith.constant 0 : index
    %c0_34 = arith.constant 0 : index
    %62 = vector.load %arg10[%c0_33, %c0_34] : memref<128x128xf32, #tpu.memory_space<vmem>>, vector<128x128xf32>
    %cst_35 = arith.constant dense<0.000000e+00> : vector<32x128xf32>
    %63 = tpu.matmul %61, %62, %cst_35 {dimension_numbers = #tpu.dot_dimension_numbers<[1], [0], [0], [1], [0, 0, 1, 1], [], []>} : vector<32x128xf32>, vector<128x128xf32>, vector<32x128xf32> -> vector<32x128xf32>
    %c0_36 = arith.constant 0 : index
    %c0_37 = arith.constant 0 : index
    %64 = vector.load %arg13[%c0_36, %c0_37] : memref<1x128xf32, #tpu.memory_space<vmem>>, vector<1x128xf32>
    %65 = vector.broadcast %64 : vector<1x128xf32> to vector<32x128xf32>
    %66 = arith.addf %63, %65 : vector<32x128xf32>
    %67 = vector.shape_cast %66 : vector<32x128xf32> to vector<1x32x128xf32>
    %c0_38 = arith.constant 0 : index
    %c0_39 = arith.constant 0 : index
    %c0_40 = arith.constant 0 : index
    %68 = vector.load %arg14[%c0_38, %c0_39, %c0_40] : memref<1x32x128xf32, #tpu.memory_space<vmem>>, vector<1x32x128xf32>
    tpu.vector_store %arg14[%c0_38, %c0_39, %c0_40], %67 {strides = array<i32>} : memref<1x32x128xf32, #tpu.memory_space<vmem>>, vector<1x32x128xf32>,
    return
  }
  func.func @transform_0(%arg0: i32) -> (i32, i32, i32) {
    %c0_i32 = arith.constant 0 : i32
    %c0_i32_0 = arith.constant 0 : i32
    %c0_i32_1 = arith.constant 0 : i32
    return %arg0, %c0_i32, %c0_i32_0 : i32, i32, i32
  }
  func.func @transform_1(%arg0: i32) -> (i32, i32) {
    %c0_i32 = arith.constant 0 : i32
    %c0_i32_0 = arith.constant 0 : i32
    %c0_i32_1 = arith.constant 0 : i32
    return %c0_i32, %c0_i32_0 : i32, i32
  }
  func.func @transform_2(%arg0: i32) -> (i32, i32) {
    %c0_i32 = arith.constant 0 : i32
    %c0_i32_0 = arith.constant 0 : i32
    %c0_i32_1 = arith.constant 0 : i32
    return %c0_i32, %c0_i32_0 : i32, i32
  }
  func.func @transform_3(%arg0: i32) -> (i32, i32) {
    %c0_i32 = arith.constant 0 : i32
    %c0_i32_0 = arith.constant 0 : i32
    %c0_i32_1 = arith.constant 0 : i32
    return %c0_i32, %c0_i32_0 : i32, i32
  }
  func.func @transform_4(%arg0: i32) -> (i32, i32) {
    %c0_i32 = arith.constant 0 : i32
    %c0_i32_0 = arith.constant 0 : i32
    %c0_i32_1 = arith.constant 0 : i32
    return %c0_i32, %c0_i32_0 : i32, i32
  }
  func.func @transform_5(%arg0: i32) -> (i32, i32) {
    %c0_i32 = arith.constant 0 : i32
    %c0_i32_0 = arith.constant 0 : i32
    %c0_i32_1 = arith.constant 0 : i32
    return %c0_i32, %c0_i32_0 : i32, i32
  }
  func.func @transform_6(%arg0: i32) -> (i32, i32) {
    %c0_i32 = arith.constant 0 : i32
    %c0_i32_0 = arith.constant 0 : i32
    %c0_i32_1 = arith.constant 0 : i32
    return %c0_i32, %c0_i32_0 : i32, i32
  }
  func.func @transform_7(%arg0: i32) -> (i32, i32) {
    %c0_i32 = arith.constant 0 : i32
    %c0_i32_0 = arith.constant 0 : i32
    %c0_i32_1 = arith.constant 0 : i32
    return %c0_i32, %c0_i32_0 : i32, i32
  }
  func.func @transform_8(%arg0: i32) -> (i32, i32) {
    %c0_i32 = arith.constant 0 : i32
    %c0_i32_0 = arith.constant 0 : i32
    %c0_i32_1 = arith.constant 0 : i32
    return %c0_i32, %c0_i32_0 : i32, i32
  }
  func.func @transform_9(%arg0: i32) -> (i32, i32) {
    %c0_i32 = arith.constant 0 : i32
    %c0_i32_0 = arith.constant 0 : i32
    %c0_i32_1 = arith.constant 0 : i32
    return %c0_i32, %c0_i32_0 : i32, i32
  }
  func.func @transform_10(%arg0: i32) -> (i32, i32) {
    %c0_i32 = arith.constant 0 : i32
    %c0_i32_0 = arith.constant 0 : i32
    %c0_i32_1 = arith.constant 0 : i32
    return %c0_i32, %c0_i32_0 : i32, i32
  }
  func.func @transform_11(%arg0: i32) -> (i32, i32) {
    %c0_i32 = arith.constant 0 : i32
    %c0_i32_0 = arith.constant 0 : i32
    %c0_i32_1 = arith.constant 0 : i32
    return %c0_i32, %c0_i32_0 : i32, i32
  }
  func.func @transform_12(%arg0: i32) -> (i32, i32) {
    %c0_i32 = arith.constant 0 : i32
    %c0_i32_0 = arith.constant 0 : i32
    %c0_i32_1 = arith.constant 0 : i32
    return %c0_i32, %c0_i32_0 : i32, i32
  }
  func.func @transform_13(%arg0: i32) -> (i32, i32, i32) {
    %c0_i32 = arith.constant 0 : i32
    %c0_i32_0 = arith.constant 0 : i32
    %c0_i32_1 = arith.constant 0 : i32
    return %arg0, %c0_i32, %c0_i32_0 : i32, i32, i32
  }
}

</mosaic_0001>

<llo_original>
// kernel: freup_areadinterpolation.1
$region0: #{freup_areadinterpolation.1}
  #allocation0 [shape = 'u32[]', space=smem, size = 0x4, offset = 0x4, fixed_abs, tag = 'smem constant byte address 0x4 - core index']
  #allocation1 [shape = 'u32[144,128]{1,0:T(1,128)}', space=vmem, size = 0x12000, scoped, tag = 'internal scratch']
  %s0 = inlined_call_operand.vmem [shape: f32[2,16,64], index: 0, kind: input, shape index: {}]
  %s1 = inlined_call_operand.vmem [shape: f32[64,128], index: 1, kind: input, shape index: {}]
  %s2 = inlined_call_operand.vmem [shape: f32[16,16], index: 2, kind: input, shape index: {}]
  %s3 = inlined_call_operand.vmem [shape: f32[16,16], index: 3, kind: input, shape index: {}]
  %s4 = inlined_call_operand.vmem [shape: f32[128,256], index: 4, kind: input, shape index: {}]
  %s5 = inlined_call_operand.vmem [shape: f32[32,16], index: 5, kind: input, shape index: {}]
  %s6 = inlined_call_operand.vmem [shape: f32[32,16], index: 6, kind: input, shape index: {}]
  %s7 = inlined_call_operand.vmem [shape: f32[128,128], index: 7, kind: input, shape index: {}]
  %s8 = inlined_call_operand.vmem [shape: f32[128,128], index: 8, kind: input, shape index: {}]
  %s9 = inlined_call_operand.vmem [shape: f32[128,128], index: 9, kind: input, shape index: {}]
  %s10 = inlined_call_operand.vmem [shape: f32[1,128], index: 10, kind: input, shape index: {}]
  %s11 = inlined_call_operand.vmem [shape: f32[1,128], index: 11, kind: input, shape index: {}]
  %s12 = inlined_call_operand.vmem [shape: f32[1,128], index: 12, kind: input, shape index: {}]
  %s13 = inlined_call_operand.vmem [shape: f32[2,32,128], index: 13, kind: output, shape index: {}]
  %s14 = sld [smem:[#allocation0]]
  $region85: #{freup_areadinterpolation.1} parent=0
    _
  %s16 = ssub.s32 1, %s14
  %s17 = scalar_select 0, %s16, %s14
  loop: start=0, step=1, limit=4
  $region2: #{freup_areadinterpolation.1} parent=0 // loop_pre_header
    _
  $region3: #{freup_areadinterpolation.1} parent=0 // loop_header
    %s19 = sphi 0, %s23
    %p20 = scmp.ge.s32.totalorder %s19, 4
    %s29 = sphi 0, %s31
    %s32 = sphi 0, %s29
    %s33 = sphi 0, %s32
    %s49 = sphi 0, %s33
    %s53 = sphi 0, %s53
    %s55 = sphi 0, %s53
    %s56 = sphi 0, %s55
    %s70 = sphi 0, %s56
    %s74 = sphi 0, %s74
    %s76 = sphi 0, %s74
    %s77 = sphi 0, %s76
    %s91 = sphi 0, %s77
    %s95 = sphi 0, %s95
    %s97 = sphi 0, %s95
    %s98 = sphi 0, %s97
    %s112 = sphi 0, %s98
    %s116 = sphi 0, %s116
    %s118 = sphi 0, %s116
    %s119 = sphi 0, %s118
    %s133 = sphi 0, %s119
    %s137 = sphi 0, %s137
    %s139 = sphi 0, %s137
    %s140 = sphi 0, %s139
    %s154 = sphi 0, %s140
    %s158 = sphi 0, %s158
    %s160 = sphi 0, %s158
    %s161 = sphi 0, %s160
    %s175 = sphi 0, %s161
    %s179 = sphi 0, %s179
    %s181 = sphi 0, %s179
    %s182 = sphi 0, %s181
    %s196 = sphi 0, %s182
    %s200 = sphi 0, %s200
    %s202 = sphi 0, %s200
    %s203 = sphi 0, %s202
    %s217 = sphi 0, %s203
    %s221 = sphi 0, %s221
    %s223 = sphi 0, %s221
    %s224 = sphi 0, %s223
    %s238 = sphi 0, %s224
    %s242 = sphi 0, %s242
    %s244 = sphi 0, %s242
    %s245 = sphi 0, %s244
    %s259 = sphi 0, %s245
    %s263 = sphi 0, %s263
    %s265 = sphi 0, %s263
    %s266 = sphi 0, %s265
    %s280 = sphi 0, %s266
    %s284 = sphi 0, %s284
    %s286 = sphi 0, %s284
    %s287 = sphi 0, %s286
    %s301 = sphi 0, %s287
    %s307 = sphi 0, %s309
    %s310 = sphi 0, %s307
    %s311 = sphi 0, %s310
    %s327 = sphi 0, %s311
  $region4: #{freup_areadinterpolation.1} parent=0 // loop_header_branch
    %22 = sbr.rel (%p20) target = $region8
  $region5: #{freup_areadinterpolation.1} parent=0 // loop_body
    %s24 = ssub.s32 %s19, 1
    %s25 = ssub.s32 %s19, 2
    %s26 = sadd.s32 %s19, 1
    %s27 = ssub.s32 %s19, %s26
    %p28 = scmp.eq.s32.totalorder %s27, 0
    %s30 = sadd.s32 %s29, 1
    %s31 = scalar_select %p28, %s29, %s30
    %p34 = pneg %p28
    %p35 = scmp.eq.s32.totalorder %s19, 1
    %p36 = por %p34, %p35
    %p37 = scmp.ne.s32.totalorder %s29, %s32
    %p38 = scmp.eq.s32.totalorder %s19, 0
    %p39 = por %p37, %p38
    %p40 = scmp.ne.s32.totalorder %s29, %s32
    %p41 = scmp.eq.s32.totalorder %s24, 1
    %p42 = por %p40, %p41
    %p43 = scmp.ne.s32.totalorder %s32, %s33
    %p44 = scmp.eq.s32.totalorder %s24, 0
    %p45 = por %p43, %p44
    %p46 = scmp.ne.s32.totalorder %s32, %s33
    %p47 = scmp.eq.s32.totalorder %s25, 1
    %p48 = por %p46, %p47
    %p50 = scmp.ne.s32.totalorder %s33, %s49
    %p51 = scmp.eq.s32.totalorder %s25, 0
    %p52 = por %p50, %p51
    %s54 = sadd.s32 %s53, 1
    %p57 = scmp.eq.s32.totalorder %s19, 1
    %p58 = scmp.ne.s32.totalorder %s53, %s55
    %p59 = scmp.eq.s32.totalorder %s19, 0
    %p60 = por %p58, %p59
    %p61 = scmp.ne.s32.totalorder %s53, %s55
    %p62 = scmp.eq.s32.totalorder %s24, 1
    %p63 = por %p61, %p62
    %p64 = scmp.ne.s32.totalorder %s55, %s56
    %p65 = scmp.eq.s32.totalorder %s24, 0
    %p66 = por %p64, %p65
    %p67 = scmp.ne.s32.totalorder %s55, %s56
    %p68 = scmp.eq.s32.totalorder %s25, 1
    %p69 = por %p67, %p68
    %p71 = scmp.ne.s32.totalorder %s56, %s70
    %p72 = scmp.eq.s32.totalorder %s25, 0
    %p73 = por %p71, %p72
    %s75 = sadd.s32 %s74, 1
    %p78 = scmp.eq.s32.totalorder %s19, 1
    %p79 = scmp.ne.s32.totalorder %s74, %s76
    %p80 = scmp.eq.s32.totalorder %s19, 0
    %p81 = por %p79, %p80
    %p82 = scmp.ne.s32.totalorder %s74, %s76
    %p83 = scmp.eq.s32.totalorder %s24, 1
    %p84 = por %p82, %p83
    %p85 = scmp.ne.s32.totalorder %s76, %s77
    %p86 = scmp.eq.s32.totalorder %s24, 0
    %p87 = por %p85, %p86
    %p88 = scmp.ne.s32.totalorder %s76, %s77
    %p89 = scmp.eq.s32.totalorder %s25, 1
    %p90 = por %p88, %p89
    %p92 = scmp.ne.s32.totalorder %s77, %s91
    %p93 = scmp.eq.s32.totalorder %s25, 0
    %p94 = por %p92, %p93
    %s96 = sadd.s32 %s95, 1
    %p99 = scmp.eq.s32.totalorder %s19, 1
    %p100 = scmp.ne.s32.totalorder %s95, %s97
    %p101 = scmp.eq.s32.totalorder %s19, 0
    %p102 = por %p100, %p101
    %p103 = scmp.ne.s32.totalorder %s95, %s97
    %p104 = scmp.eq.s32.totalorder %s24, 1
    %p105 = por %p103, %p104
    %p106 = scmp.ne.s32.totalorder %s97, %s98
    %p107 = scmp.eq.s32.totalorder %s24, 0
    %p108 = por %p106, %p107
    %p109 = scmp.ne.s32.totalorder %s97, %s98
    %p110 = scmp.eq.s32.totalorder %s25, 1
    %p111 = por %p109, %p110
    %p113 = scmp.ne.s32.totalorder %s98, %s112
    %p114 = scmp.eq.s32.totalorder %s25, 0
    %p115 = por %p113, %p114
    %s117 = sadd.s32 %s116, 1
    %p120 = scmp.eq.s32.totalorder %s19, 1
    %p121 = scmp.ne.s32.totalorder %s116, %s118
    %p122 = scmp.eq.s32.totalorder %s19, 0
    %p123 = por %p121, %p122
    %p124 = scmp.ne.s32.totalorder %s116, %s118
    %p125 = scmp.eq.s32.totalorder %s24, 1
    %p126 = por %p124, %p125
    %p127 = scmp.ne.s32.totalorder %s118, %s119
    %p128 = scmp.eq.s32.totalorder %s24, 0
    %p129 = por %p127, %p128
    %p130 = scmp.ne.s32.totalorder %s118, %s119
    %p131 = scmp.eq.s32.totalorder %s25, 1
    %p132 = por %p130, %p131
    %p134 = scmp.ne.s32.totalorder %s119, %s133
    %p135 = scmp.eq.s32.totalorder %s25, 0
    %p136 = por %p134, %p135
    %s138 = sadd.s32 %s137, 1
    %p141 = scmp.eq.s32.totalorder %s19, 1
    %p142 = scmp.ne.s32.totalorder %s137, %s139
    %p143 = scmp.eq.s32.totalorder %s19, 0
    %p144 = por %p142, %p143
    %p145 = scmp.ne.s32.totalorder %s137, %s139
    %p146 = scmp.eq.s32.totalorder %s24, 1
    %p147 = por %p145, %p146
    %p148 = scmp.ne.s32.totalorder %s139, %s140
    %p149 = scmp.eq.s32.totalorder %s24, 0
    %p150 = por %p148, %p149
    %p151 = scmp.ne.s32.totalorder %s139, %s140
    %p152 = scmp.eq.s32.totalorder %s25, 1
    %p153 = por %p151, %p152
    %p155 = scmp.ne.s32.totalorder %s140, %s154
    %p156 = scmp.eq.s32.totalorder %s25, 0
    %p157 = por %p155, %p156
    %s159 = sadd.s32 %s158, 1
    %p162 = scmp.eq.s32.totalorder %s19, 1
    %p163 = scmp.ne.s32.totalorder %s158, %s160
    %p164 = scmp.eq.s32.totalorder %s19, 0
    %p165 = por %p163, %p164
    %p166 = scmp.ne.s32.totalorder %s158, %s160
    %p167 = scmp.eq.s32.totalorder %s24, 1
    %p168 = por %p166, %p167
    %p169 = scmp.ne.s32.totalorder %s160, %s161
    %p170 = scmp.eq.s32.totalorder %s24, 0
    %p171 = por %p169, %p170
    %p172 = scmp.ne.s32.totalorder %s160, %s161
    %p173 = scmp.eq.s32.totalorder %s25, 1
    %p174 = por %p172, %p173
    %p176 = scmp.ne.s32.totalorder %s161, %s175
    %p177 = scmp.eq.s32.totalorder %s25, 0
    %p178 = por %p176, %p177
    %s180 = sadd.s32 %s179, 1
    %p183 = scmp.eq.s32.totalorder %s19, 1
    %p184 = scmp.ne.s32.totalorder %s179, %s181
    %p185 = scmp.eq.s32.totalorder %s19, 0
    %p186 = por %p184, %p185
    %p187 = scmp.ne.s32.totalorder %s179, %s181
    %p188 = scmp.eq.s32.totalorder %s24, 1
    %p189 = por %p187, %p188
    %p190 = scmp.ne.s32.totalorder %s181, %s182
    %p191 = scmp.eq.s32.totalorder %s24, 0
    %p192 = por %p190, %p191
    %p193 = scmp.ne.s32.totalorder %s181, %s182
    %p194 = scmp.eq.s32.totalorder %s25, 1
    %p195 = por %p193, %p194
    %p197 = scmp.ne.s32.totalorder %s182, %s196
    %p198 = scmp.eq.s32.totalorder %s25, 0
    %p199 = por %p197, %p198
    %s201 = sadd.s32 %s200, 1
    %p204 = scmp.eq.s32.totalorder %s19, 1
    %p205 = scmp.ne.s32.totalorder %s200, %s202
    %p206 = scmp.eq.s32.totalorder %s19, 0
    %p207 = por %p205, %p206
    %p208 = scmp.ne.s32.totalorder %s200, %s202
    %p209 = scmp.eq.s32.totalorder %s24, 1
    %p210 = por %p208, %p209
    %p211 = scmp.ne.s32.totalorder %s202, %s203
    %p212 = scmp.eq.s32.totalorder %s24, 0
    %p213 = por %p211, %p212
    %p214 = scmp.ne.s32.totalorder %s202, %s203
    %p215 = scmp.eq.s32.totalorder %s25, 1
    %p216 = por %p214, %p215
    %p218 = scmp.ne.s32.totalorder %s203, %s217
    %p219 = scmp.eq.s32.totalorder %s25, 0
    %p220 = por %p218, %p219
    %s222 = sadd.s32 %s221, 1
    %p225 = scmp.eq.s32.totalorder %s19, 1
    %p226 = scmp.ne.s32.totalorder %s221, %s223
    %p227 = scmp.eq.s32.totalorder %s19, 0
    %p228 = por %p226, %p227
    %p229 = scmp.ne.s32.totalorder %s221, %s223
    %p230 = scmp.eq.s32.totalorder %s24, 1
    %p231 = por %p229, %p230
    %p232 = scmp.ne.s32.totalorder %s223, %s224
    %p233 = scmp.eq.s32.totalorder %s24, 0
    %p234 = por %p232, %p233
    %p235 = scmp.ne.s32.totalorder %s223, %s224
    %p236 = scmp.eq.s32.totalorder %s25, 1
    %p237 = por %p235, %p236
    %p239 = scmp.ne.s32.totalorder %s224, %s238
    %p240 = scmp.eq.s32.totalorder %s25, 0
    %p241 = por %p239, %p240
    %s243 = sadd.s32 %s242, 1
    %p246 = scmp.eq.s32.totalorder %s19, 1
    %p247 = scmp.ne.s32.totalorder %s242, %s244
    %p248 = scmp.eq.s32.totalorder %s19, 0
    %p249 = por %p247, %p248
    %p250 = scmp.ne.s32.totalorder %s242, %s244
    %p251 = scmp.eq.s32.totalorder %s24, 1
    %p252 = por %p250, %p251
    %p253 = scmp.ne.s32.totalorder %s244, %s245
    %p254 = scmp.eq.s32.totalorder %s24, 0
    %p255 = por %p253, %p254
    %p256 = scmp.ne.s32.totalorder %s244, %s245
    %p257 = scmp.eq.s32.totalorder %s25, 1
    %p258 = por %p256, %p257
    %p260 = scmp.ne.s32.totalorder %s245, %s259
    %p261 = scmp.eq.s32.totalorder %s25, 0
    %p262 = por %p260, %p261
    %s264 = sadd.s32 %s263, 1
    %p267 = scmp.eq.s32.totalorder %s19, 1
    %p268 = scmp.ne.s32.totalorder %s263, %s265
    %p269 = scmp.eq.s32.totalorder %s19, 0
    %p270 = por %p268, %p269
    %p271 = scmp.ne.s32.totalorder %s263, %s265
    %p272 = scmp.eq.s32.totalorder %s24, 1
    %p273 = por %p271, %p272
    %p274 = scmp.ne.s32.totalorder %s265, %s266
    %p275 = scmp.eq.s32.totalorder %s24, 0
    %p276 = por %p274, %p275
    %p277 = scmp.ne.s32.totalorder %s265, %s266
    %p278 = scmp.eq.s32.totalorder %s25, 1
    %p279 = por %p277, %p278
    %p281 = scmp.ne.s32.totalorder %s266, %s280
    %p282 = scmp.eq.s32.totalorder %s25, 0
    %p283 = por %p281, %p282
    %s285 = sadd.s32 %s284, 1
    %p288 = scmp.eq.s32.totalorder %s19, 1
    %p289 = scmp.ne.s32.totalorder %s284, %s286
    %p290 = scmp.eq.s32.totalorder %s19, 0
    %p291 = por %p289, %p290
    %p292 = scmp.ne.s32.totalorder %s284, %s286
    %p293 = scmp.eq.s32.totalorder %s24, 1
    %p294 = por %p292, %p293
    %p295 = scmp.ne.s32.totalorder %s286, %s287
    %p296 = scmp.eq.s32.totalorder %s24, 0
    %p297 = por %p295, %p296
    %p298 = scmp.ne.s32.totalorder %s286, %s287
    %p299 = scmp.eq.s32.totalorder %s25, 1
    %p300 = por %p298, %p299
    %p302 = scmp.ne.s32.totalorder %s287, %s301
    %p303 = scmp.eq.s32.totalorder %s25, 0
    %p304 = por %p302, %p303
    %s305 = ssub.s32 %s19, %s26
    %p306 = scmp.eq.s32.totalorder %s305, 0
    %s308 = sadd.s32 %s307, 1
    %s309 = scalar_select %p306, %s307, %s308
    %p312 = pneg %p306
    %p313 = scmp.eq.s32.totalorder %s19, 1
    %p314 = por %p312, %p313
    %p315 = scmp.ne.s32.totalorder %s307, %s310
    %p316 = scmp.eq.s32.totalorder %s19, 0
    %p317 = por %p315, %p316
    %p318 = scmp.ne.s32.totalorder %s307, %s310
    %p319 = scmp.eq.s32.totalorder %s24, 1
    %p320 = por %p318, %p319
    %p321 = scmp.ne.s32.totalorder %s310, %s311
    %p322 = scmp.eq.s32.totalorder %s24, 0
    %p323 = por %p321, %p322
    %p324 = scmp.ne.s32.totalorder %s310, %s311
    %p325 = scmp.eq.s32.totalorder %s25, 1
    %p326 = por %p324, %p325
    %p328 = scmp.ne.s32.totalorder %s311, %s327
    %p329 = scmp.eq.s32.totalorder %s25, 0
    %p330 = por %p328, %p329
    %p331 = scmp.le.s32.totalorder 1, %s19
    %p332 = scmp.lt.s32.totalorder %s19, 3
    %p333 = pnand %p331, %p332
    %p334 = pneg %p333
    // Predicated region
    $region9: #{freup_areadinterpolation.1} parent=5 // pred_check
      _
    $region10: #{freup_areadinterpolation.1} parent=5 // pred_check_branch
      %336 = sbr.rel (%p333) target = $region12
    $region11: #{freup_areadinterpolation.1} parent=5 // pred_region
      %s337 = ssub.s32 %s19, 1
      // Predicated region
      $region13: #{freup_areadinterpolation.1} parent=11 // pred_check
        %p338 = pneg %p66
      $region14: #{freup_areadinterpolation.1} parent=11 // pred_check_branch
        %340 = sbr.rel (%p338) target = $region16
      $region15: #{freup_areadinterpolation.1} parent=11 // pred_region
        _
      $region16: #{freup_areadinterpolation.1} parent=11 // pred_fallthru
        _
      // Predicated region
      $region17: #{freup_areadinterpolation.1} parent=11 // pred_check
        %p341 = pneg %p87
      $region18: #{freup_areadinterpolation.1} parent=11 // pred_check_branch
        %343 = sbr.rel (%p341) target = $region20
      $region19: #{freup_areadinterpolation.1} parent=11 // pred_region
        _
      $region20: #{freup_areadinterpolation.1} parent=11 // pred_fallthru
        _
      // Predicated region
      $region21: #{freup_areadinterpolation.1} parent=11 // pred_check
        %p344 = pneg %p108
      $region22: #{freup_areadinterpolation.1} parent=11 // pred_check_branch
        %346 = sbr.rel (%p344) target = $region24
      $region23: #{freup_areadinterpolation.1} parent=11 // pred_region
        _
      $region24: #{freup_areadinterpolation.1} parent=11 // pred_fallthru
        _
      // Predicated region
      $region25: #{freup_areadinterpolation.1} parent=11 // pred_check
        %p347 = pneg %p129
      $region26: #{freup_areadinterpolation.1} parent=11 // pred_check_branch
        %349 = sbr.rel (%p347) target = $region28
      $region27: #{freup_areadinterpolation.1} parent=11 // pred_region
        _
      $region28: #{freup_areadinterpolation.1} parent=11 // pred_fallthru
        _
      // Predicated region
      $region29: #{freup_areadinterpolation.1} parent=11 // pred_check
        %p350 = pneg %p150
      $region30: #{freup_areadinterpolation.1} parent=11 // pred_check_branch
        %352 = sbr.rel (%p350) target = $region32
      $region31: #{freup_areadinterpolation.1} parent=11 // pred_region
        _
      $region32: #{freup_areadinterpolation.1} parent=11 // pred_fallthru
        _
      // Predicated region
      $region33: #{freup_areadinterpolation.1} parent=11 // pred_check
        %p353 = pneg %p171
      $region34: #{freup_areadinterpolation.1} parent=11 // pred_check_branch
        %355 = sbr.rel (%p353) target = $region36
      $region35: #{freup_areadinterpolation.1} parent=11 // pred_region
        _
      $region36: #{freup_areadinterpolation.1} parent=11 // pred_fallthru
        _
      // Predicated region
      $region37: #{freup_areadinterpolation.1} parent=11 // pred_check
        %p356 = pneg %p192
      $region38: #{freup_areadinterpolation.1} parent=11 // pred_check_branch
        %358 = sbr.rel (%p356) target = $region40
      $region39: #{freup_areadinterpolation.1} parent=11 // pred_region
        _
      $region40: #{freup_areadinterpolation.1} parent=11 // pred_fallthru
        _
      // Predicated region
      $region41: #{freup_areadinterpolation.1} parent=11 // pred_check
        %p359 = pneg %p213
      $region42: #{freup_areadinterpolation.1} parent=11 // pred_check_branch
        %361 = sbr.rel (%p359) target = $region44
      $region43: #{freup_areadinterpolation.1} parent=11 // pred_region
        _
      $region44: #{freup_areadinterpolation.1} parent=11 // pred_fallthru
        _
      // Predicated region
      $region45: #{freup_areadinterpolation.1} parent=11 // pred_check
        %p362 = pneg %p234
      $region46: #{freup_areadinterpolation.1} parent=11 // pred_check_branch
        %364 = sbr.rel (%p362) target = $region48
      $region47: #{freup_areadinterpolation.1} parent=11 // pred_region
        _
      $region48: #{freup_areadinterpolation.1} parent=11 // pred_fallthru
        _
      // Predicated region
      $region49: #{freup_areadinterpolation.1} parent=11 // pred_check
        %p365 = pneg %p255
      $region50: #{freup_areadinterpolation.1} parent=11 // pred_check_branch
        %367 = sbr.rel (%p365) target = $region52
      $region51: #{freup_areadinterpolation.1} parent=11 // pred_region
        _
      $region52: #{freup_areadinterpolation.1} parent=11 // pred_fallthru
        _
      // Predicated region
      $region53: #{freup_areadinterpolation.1} parent=11 // pred_check
        %p368 = pneg %p276
      $region54: #{freup_areadinterpolation.1} parent=11 // pred_check_branch
        %370 = sbr.rel (%p368) target = $region56
      $region55: #{freup_areadinterpolation.1} parent=11 // pred_region
        _
      $region56: #{freup_areadinterpolation.1} parent=11 // pred_fallthru
        _
      // Predicated region
      $region57: #{freup_areadinterpolation.1} parent=11 // pred_check
        %p371 = pneg %p297
      $region58: #{freup_areadinterpolation.1} parent=11 // pred_check_branch
        %373 = sbr.rel (%p371) target = $region60
      $region59: #{freup_areadinterpolation.1} parent=11 // pred_region
        _
      $region60: #{freup_areadinterpolation.1} parent=11 // pred_fallthru
        _
    $region12: #{freup_areadinterpolation.1} parent=5 // pred_fallthru
      _
    %p374 = scmp.lt.s32.totalorder %s19, 2
    // Predicated region
    $region61: #{freup_areadinterpolation.1} parent=5 // pred_check
      %p375 = pneg %p374
    $region62: #{freup_areadinterpolation.1} parent=5 // pred_check_branch
      %377 = sbr.rel (%p375) target = $region64
    $region63: #{freup_areadinterpolation.1} parent=5 // pred_region
      // Predicated region
      $region65: #{freup_areadinterpolation.1} parent=63 // pred_check
        %p378 = pneg %p39
      $region66: #{freup_areadinterpolation.1} parent=63 // pred_check_branch
        %380 = sbr.rel (%p378) target = $region68
      $region67: #{freup_areadinterpolation.1} parent=63 // pred_region
        %p381 = scmp.lt.s32.totalorder %s19, 1
        %s382 = scalar_select %p381, %s19, 1
        %s383 = smul.addr %s382, 2
        %s384 = smul.addr %s383, 8
        %s385 = scalar_lea.vmem %s0, %s384
      $region68: #{freup_areadinterpolation.1} parent=63 // pred_fallthru
        _
    $region64: #{freup_areadinterpolation.1} parent=5 // pred_fallthru
      _
    %p386 = scmp.le.s32.totalorder 1, %s19
    %p387 = scmp.lt.s32.totalorder %s19, 3
    %p388 = pnand %p386, %p387
    %p389 = pneg %p388
    // Predicated region
    $region69: #{freup_areadinterpolation.1} parent=5 // pred_check
      _
    $region70: #{freup_areadinterpolation.1} parent=5 // pred_check_branch
      %391 = sbr.rel (%p388) target = $region72
    $region71: #{freup_areadinterpolation.1} parent=5 // pred_region
      %s392 = ssub.s32 %s19, 1
      %p393 = scmp.lt.s32.totalorder %s24, 1
      %s394 = scalar_select %p393, %s24, 1
      %s395 = smul.addr %s394, 2
      %s396 = smul.addr %s395, 8
      %s397 = scalar_lea.vmem %s0, %s396
      %p398 = pneg %p45
      %p399 = pneg %p42
      %p400 = pneg %p66
      %p401 = pneg %p63
      %p402 = pneg %p87
      %p403 = pneg %p84
      %p404 = pneg %p108
      %p405 = pneg %p105
      %p406 = pneg %p129
      %p407 = pneg %p126
      %p408 = pneg %p150
      %p409 = pneg %p147
      %p410 = pneg %p171
      %p411 = pneg %p168
      %p412 = pneg %p192
      %p413 = pneg %p189
      %p414 = pneg %p213
      %p415 = pneg %p210
      %p416 = pneg %p234
      %p417 = pneg %p231
      %p418 = pneg %p255
      %p419 = pneg %p252
      %p420 = pneg %p276
      %p421 = pneg %p273
      %p422 = pneg %p297
      %p423 = pneg %p294
      %p424 = pneg %p323
      %p425 = pneg %p320
      %p426 = scmp.lt.s32.totalorder %s24, 1
      %s427 = scalar_select %p426, %s24, 1
      %s428 = smul.addr %s427, 4
      %s429 = smul.addr %s428, 8
      %s430 = scalar_lea.vmem %s13, %s429
      %p431 = scmp.lt.s32.totalorder %s24, 1
      %s432 = scalar_select %p431, %s24, 1
      %s433 = smul.addr %s432, 2
      %s434 = smul.addr %s433, 8
      %s435 = scalar_lea.vmem %s0, %s434
      %p436 = scmp.lt.s32.totalorder %s24, 1
      %s437 = scalar_select %p436, %s24, 1
      %s438 = smul.addr %s437, 4
      %s439 = smul.addr %s438, 8
      %s440 = scalar_lea.vmem %s13, %s439
      %v441 = vld [vmem:[%s435] sm:$0xff]
      %v442 = vld [vmem:[%s435 + $0x8] sm:$0xff]
      %v443 = vld [vmem:[%s1] sm:$0xff]
      %v444 = vld [vmem:[%s1 + $0x8] sm:$0xff]
      %v445 = vld [vmem:[%s1 + $0x10] sm:$0xff]
      %v446 = vld [vmem:[%s1 + $0x18] sm:$0xff]
      %v447 = vld [vmem:[%s1 + $0x20] sm:$0xff]
      %v448 = vld [vmem:[%s1 + $0x28] sm:$0xff]
      %v449 = vld [vmem:[%s1 + $0x30] sm:$0xff]
      %v450 = vld [vmem:[%s1 + $0x38] sm:$0xff]
      %vm451 = vcmask 523264
      %v453 = vsel %vm451, %v441, 0
      %v456 = vsel %vm451, %v442, 0
      %458 = vmatprep.subr.mxu0 0.0
      %459 = vmatpush1.msra.mxu0 %v443
      %460 = vmatprep.subr.mxu0 0.0
      %461 = vmatpush1.msra.mxu0 %v444
      %462 = vmatprep.subr.mxu0 0.0
      %463 = vmatpush1.msra.mxu0 %v445
      %464 = vmatprep.subr.mxu0 0.0
      %465 = vmatpush1.msra.mxu0 %v446
      %466 = vmatprep.subr.mxu0 0.0
      %467 = vmatpush1.msra.mxu0 %v447
      %468 = vmatprep.subr.mxu0 0.0
      %469 = vmatpush1.msra.mxu0 %v448
      %470 = vmatprep.subr.mxu0 0.0
      %471 = vmatpush1.msra.mxu0 %v449
      %472 = vmatprep.subr.mxu0 0.0
      %473 = vmatpush1.msra.mxu0 %v450
      %474 = vmatprep.subr.mxu0 0.0
      %475 = vmatpush1.msra.mxu0 0.0
      %476 = vmatprep.subr.mxu0 0.0
      %477 = vmatpush1.msra.mxu0 0.0
      %478 = vmatprep.subr.mxu0 0.0
      %479 = vmatpush1.msra.mxu0 0.0
      %480 = vmatprep.subr.mxu0 0.0
      %481 = vmatpush1.msra.mxu0 0.0
      %482 = vmatprep.subr.mxu0 0.0
      %483 = vmatpush1.msra.mxu0 0.0
      %484 = vmatprep.subr.mxu0 0.0
      %485 = vmatpush1.msra.mxu0 0.0
      %486 = vmatprep.subr.mxu0 0.0
      %487 = vmatpush1.msra.mxu0 0.0
      %488 = vmatprep.subr.mxu0 0.0
      %489 = vmatpush1.msra.mxu0 0.0
      %490 = vmatprep.subr.mxu0 0.0
      %491 = vmatpush1.msra.mxu0 0.0
      %492 = vmatprep.subr.mxu0 0.0
      %493 = vmatpush1.msra.mxu0 0.0
      %494 = vmatprep.subr.mxu0 0.0
      %495 = vmatpush1.msra.mxu0 0.0
      %496 = vmatprep.subr.mxu0 0.0
      %497 = vmatpush1.msra.mxu0 0.0
      %498 = vmatprep.subr.mxu0 0.0
      %499 = vmatpush1.msra.mxu0 0.0
      %500 = vmatprep.subr.mxu0 0.0
      %501 = vmatpush1.msra.mxu0 0.0
      %502 = vmatprep.subr.mxu0 0.0
      %503 = vmatpush1.msra.mxu0 0.0
      %504 = vmatprep.subr.mxu0 0.0
      %505 = vmatpush1.msra.mxu0 0.0
      %506 = vmatprep.subr.mxu0 0.0
      %507 = vmatpush1.msra.mxu0 0.0
      %508 = vmatprep.subr.mxu0 0.0
      %509 = vmatpush1.msra.mxu0 0.0
      %510 = vmatprep.subr.mxu0 0.0
      %511 = vmatpush1.msra.mxu0 0.0
      %512 = vmatprep.subr.mxu0 0.0
      %513 = vmatpush1.msra.mxu0 0.0
      %514 = vmatprep.subr.mxu0 0.0
      %515 = vmatpush1.msra.mxu0 0.0
      %516 = vmatprep.subr.mxu0 0.0
      %517 = vmatpush1.msra.mxu0 0.0
      %518 = vmatprep.subr.mxu0 0.0
      %519 = vmatpush1.msra.mxu0 0.0
      %520 = vmatprep.subr.mxu0 0.0
      %521 = vmatpush1.msra.mxu0 0.0
      %522 = vmatprep.mubr.f32.mxu0 0.0
      %523 = vmatmul.mubr.f32.gmra.mrb[0].mxu0 %v453
      %v524 = vpop.f32.mrb[0].mxu0
      %v525 = vadd.f32 0.0, %v524
      %v526 = vpop.f32.mrb[0].mxu0
      %527 = vmatprep.mubr.f32.mxu0 0.0
      %528 = vmatmul.mubr.f32.gmra.mrb[0].mxu0 %v456
      %v529 = vpop.f32.mrb[0].mxu0
      %v530 = vadd.f32 0.0, %v529
      %v531 = vpop.f32.mrb[0].mxu0
      %532 = vdwg.mxu0
      %v533 = vld [vmem:[%s2] sm:$0xff]
      %v534 = vld [vmem:[%s2 + $0x8] sm:$0xff]
      %v535 = vld [vmem:[%s3] sm:$0xff]
      %v536 = vld [vmem:[%s3 + $0x8] sm:$0xff]
      %v537 = vsub.f32 0.0, %v525
      %v538 = vsub.f32 0.0, %v530
      %541 = vrot.lane.b32.xlu0 %v537, 64
      %v542 = vpop.permute.xlu0 %541
      %543 = vrot.lane.b32.xlu0 %v538, 64
      %v544 = vpop.permute.xlu0 %543
      %549 = vrot.lane.b32.xlu0 %v525, 64
      %v550 = vpop.permute.xlu0 %549
      %551 = vrot.lane.b32.xlu0 %v530, 64
      %v552 = vpop.permute.xlu0 %551
      %v555 = vsel %vm451, %v542, %v550
      %v556 = vsel %vm451, %v544, %v552
      %vm557 = vcmask 130048
      %v559 = vsel %vm557, %v535, 0
      %v562 = vsel %vm557, %v536, 0
      %564 = vmatprep.subr.mxu0 0.0
      %565 = vmatpush1.msra.mxu0 %v555
      %566 = vmatprep.subr.mxu0 0.0
      %567 = vmatpush1.msra.mxu0 %v556
      %568 = vmatprep.subr.mxu0 0.0
      %569 = vmatpush1.msra.mxu0 0.0
      %570 = vmatprep.subr.mxu0 0.0
      %571 = vmatpush1.msra.mxu0 0.0
      %572 = vmatprep.subr.mxu0 0.0
      %573 = vmatpush1.msra.mxu0 0.0
      %574 = vmatprep.subr.mxu0 0.0
      %575 = vmatpush1.msra.mxu0 0.0
      %576 = vmatprep.subr.mxu0 0.0
      %577 = vmatpush1.msra.mxu0 0.0
      %578 = vmatprep.subr.mxu0 0.0
      %579 = vmatpush1.msra.mxu0 0.0
      %580 = vmatprep.subr.mxu0 0.0
      %581 = vmatpush1.msra.mxu0 0.0
      %582 = vmatprep.subr.mxu0 0.0
      %583 = vmatpush1.msra.mxu0 0.0
      %584 = vmatprep.subr.mxu0 0.0
      %585 = vmatpush1.msra.mxu0 0.0
      %586 = vmatprep.subr.mxu0 0.0
      %587 = vmatpush1.msra.mxu0 0.0
      %588 = vmatprep.subr.mxu0 0.0
      %589 = vmatpush1.msra.mxu0 0.0
      %590 = vmatprep.subr.mxu0 0.0
      %591 = vmatpush1.msra.mxu0 0.0
      %592 = vmatprep.subr.mxu0 0.0
      %593 = vmatpush1.msra.mxu0 0.0
      %594 = vmatprep.subr.mxu0 0.0
      %595 = vmatpush1.msra.mxu0 0.0
      %596 = vmatprep.subr.mxu0 0.0
      %597 = vmatpush1.msra.mxu0 0.0
      %598 = vmatprep.subr.mxu0 0.0
      %599 = vmatpush1.msra.mxu0 0.0
      %600 = vmatprep.subr.mxu0 0.0
      %601 = vmatpush1.msra.mxu0 0.0
      %602 = vmatprep.subr.mxu0 0.0
      %603 = vmatpush1.msra.mxu0 0.0
      %604 = vmatprep.subr.mxu0 0.0
      %605 = vmatpush1.msra.mxu0 0.0
      %606 = vmatprep.subr.mxu0 0.0
      %607 = vmatpush1.msra.mxu0 0.0
      %608 = vmatprep.subr.mxu0 0.0
      %609 = vmatpush1.msra.mxu0 0.0
      %610 = vmatprep.subr.mxu0 0.0
      %611 = vmatpush1.msra.mxu0 0.0
      %612 = vmatprep.subr.mxu0 0.0
      %613 = vmatpush1.msra.mxu0 0.0
      %614 = vmatprep.subr.mxu0 0.0
      %615 = vmatpush1.msra.mxu0 0.0
      %616 = vmatprep.subr.mxu0 0.0
      %617 = vmatpush1.msra.mxu0 0.0
      %618 = vmatprep.subr.mxu0 0.0
      %619 = vmatpush1.msra.mxu0 0.0
      %620 = vmatprep.subr.mxu0 0.0
      %621 = vmatpush1.msra.mxu0 0.0
      %622 = vmatprep.subr.mxu0 0.0
      %623 = vmatpush1.msra.mxu0 0.0
      %624 = vmatprep.subr.mxu0 0.0
      %625 = vmatpush1.msra.mxu0 0.0
      %626 = vmatprep.subr.mxu0 0.0
      %627 = vmatpush1.msra.mxu0 0.0
      %628 = vmatprep.mubr.f32.mxu0 0.0
      %629 = vmatmul.mubr.f32.gmra.mrb[0].mxu0 %v559
      %v630 = vpop.f32.mrb[0].mxu0
      %v631 = vadd.f32 0.0, %v630
      %v632 = vpop.f32.mrb[0].mxu0
      %633 = vmatprep.mubr.f32.mxu0 0.0
      %634 = vmatmul.mubr.f32.gmra.mrb[0].mxu0 %v562
      %v635 = vpop.f32.mrb[0].mxu0
      %v636 = vadd.f32 0.0, %v635
      %v637 = vpop.f32.mrb[0].mxu0
      %638 = vdwg.mxu0
      %v640 = vsel %vm557, %v533, 0
      %v643 = vsel %vm557, %v534, 0
      %645 = vmatprep.subr.mxu0 0.0
      %646 = vmatpush1.msra.mxu0 %v525
      %647 = vmatprep.subr.mxu0 0.0
      %648 = vmatpush1.msra.mxu0 %v530
      %649 = vmatprep.subr.mxu0 0.0
      %650 = vmatpush1.msra.mxu0 0.0
      %651 = vmatprep.subr.mxu0 0.0
      %652 = vmatpush1.msra.mxu0 0.0
      %653 = vmatprep.subr.mxu0 0.0
      %654 = vmatpush1.msra.mxu0 0.0
      %655 = vmatprep.subr.mxu0 0.0
      %656 = vmatpush1.msra.mxu0 0.0
      %657 = vmatprep.subr.mxu0 0.0
      %658 = vmatpush1.msra.mxu0 0.0
      %659 = vmatprep.subr.mxu0 0.0
      %660 = vmatpush1.msra.mxu0 0.0
      %661 = vmatprep.subr.mxu0 0.0
      %662 = vmatpush1.msra.mxu0 0.0
      %663 = vmatprep.subr.mxu0 0.0
      %664 = vmatpush1.msra.mxu0 0.0
      %665 = vmatprep.subr.mxu0 0.0
      %666 = vmatpush1.msra.mxu0 0.0
      %667 = vmatprep.subr.mxu0 0.0
      %668 = vmatpush1.msra.mxu0 0.0
      %669 = vmatprep.subr.mxu0 0.0
      %670 = vmatpush1.msra.mxu0 0.0
      %671 = vmatprep.subr.mxu0 0.0
      %672 = vmatpush1.msra.mxu0 0.0
      %673 = vmatprep.subr.mxu0 0.0
      %674 = vmatpush1.msra.mxu0 0.0
      %675 = vmatprep.subr.mxu0 0.0
      %676 = vmatpush1.msra.mxu0 0.0
      %677 = vmatprep.subr.mxu0 0.0
      %678 = vmatpush1.msra.mxu0 0.0
      %679 = vmatprep.subr.mxu0 0.0
      %680 = vmatpush1.msra.mxu0 0.0
      %681 = vmatprep.subr.mxu0 0.0
      %682 = vmatpush1.msra.mxu0 0.0
      %683 = vmatprep.subr.mxu0 0.0
      %684 = vmatpush1.msra.mxu0 0.0
      %685 = vmatprep.subr.mxu0 0.0
      %686 = vmatpush1.msra.mxu0 0.0
      %687 = vmatprep.subr.mxu0 0.0
      %688 = vmatpush1.msra.mxu0 0.0
      %689 = vmatprep.subr.mxu0 0.0
      %690 = vmatpush1.msra.mxu0 0.0
      %691 = vmatprep.subr.mxu0 0.0
      %692 = vmatpush1.msra.mxu0 0.0
      %693 = vmatprep.subr.mxu0 0.0
      %694 = vmatpush1.msra.mxu0 0.0
      %695 = vmatprep.subr.mxu0 0.0
      %696 = vmatpush1.msra.mxu0 0.0
      %697 = vmatprep.subr.mxu0 0.0
      %698 = vmatpush1.msra.mxu0 0.0
      %699 = vmatprep.subr.mxu0 0.0
      %700 = vmatpush1.msra.mxu0 0.0
      %701 = vmatprep.subr.mxu0 0.0
      %702 = vmatpush1.msra.mxu0 0.0
      %703 = vmatprep.subr.mxu0 0.0
      %704 = vmatpush1.msra.mxu0 0.0
      %705 = vmatprep.subr.mxu0 0.0
      %706 = vmatpush1.msra.mxu0 0.0
      %707 = vmatprep.subr.mxu0 0.0
      %708 = vmatpush1.msra.mxu0 0.0
      %709 = vmatprep.mubr.f32.mxu0 0.0
      %710 = vmatmul.mubr.f32.gmra.mrb[0].mxu0 %v640
      %v711 = vpop.f32.mrb[0].mxu0
      %v712 = vadd.f32 %v631, %v711
      %v713 = vpop.f32.mrb[0].mxu0
      %714 = vmatprep.mubr.f32.mxu0 0.0
      %715 = vmatmul.mubr.f32.gmra.mrb[0].mxu0 %v643
      %v716 = vpop.f32.mrb[0].mxu0
      %v717 = vadd.f32 %v636, %v716
      %v718 = vpop.f32.mrb[0].mxu0
      %719 = vdwg.mxu0
      %v720 = vmul.f32 %v712, %v712
      %v721 = vmul.f32 %v717, %v717
      %724 = vrot.lane.b32.xlu0 %v720, 64
      %v725 = vpop.permute.xlu0 %724
      %726 = vrot.lane.b32.xlu0 %v721, 64
      %v727 = vpop.permute.xlu0 %726
      %v730 = vadd.f32 %v720, %v725
      %v731 = vadd.f32 %v721, %v727
      %v732 = vrsqrt.pop %v730
      %v733 = vmul.f32 %v730, %v732
      %vm734 = vcmp.eq.f32.partialorder %v730, inf
      %v735 = vsel %vm734, %v730, %v733
      %vm736 = vcmp.eq.f32.partialorder %v730, 0.0
      %v737 = vand.u32 %v730, 2147483648
      %v738 = vsel %vm736, %v737, %v735
      %v739 = vrsqrt.pop %v731
      %v740 = vmul.f32 %v731, %v739
      %vm741 = vcmp.eq.f32.partialorder %v731, inf
      %v742 = vsel %vm741, %v731, %v740
      %vm743 = vcmp.eq.f32.partialorder %v731, 0.0
      %v744 = vand.u32 %v731, 2147483648
      %v745 = vsel %vm743, %v744, %v742
      %748 = vrot.lane.b32.xlu0 %v712, 64
      %v749 = vpop.permute.xlu0 %748
      %750 = vrot.lane.b32.xlu0 %v717, 64
      %v751 = vpop.permute.xlu0 %750
      %v754 = vand.u32 2147483647, %v749
      %v755 = vand.u32 2147483647, %v712
      %v756 = vmin.f32 %v754, %v755
      %v757 = vmax.f32 %v754, %v755
      %v758 = vrcp.pop %v757
      %v759 = vmul.f32 %v756, %v758
      %v760 = vmul.f32 %v759, %v759
      %v761 = vmul.f32 0.002785687, %v760
      %v762 = vadd.f32 %v761, -0.015866
      %v763 = vmul.f32 %v762, %v760
      %v764 = vadd.f32 %v763, 0.04247222
      %v765 = vmul.f32 %v764, %v760
      %v766 = vadd.f32 %v765, -0.074975304
      %v767 = vmul.f32 %v766, %v760
      %v768 = vadd.f32 %v767, 0.1064488
      %v769 = vmul.f32 %v768, %v760
      %v770 = vadd.f32 %v769, -0.14207031
      %v771 = vmul.f32 %v770, %v760
      %v772 = vadd.f32 %v771, 0.19993454
      %v773 = vmul.f32 %v772, %v760
      %v774 = vadd.f32 %v773, -0.33333147
      %v775 = vmul.f32 %v774, %v760
      %v776 = vmul.f32 %v775, %v759
      %v777 = vadd.f32 %v776, %v759
      %vm778 = vcmp.gt.f32.partialorder %v755, %v754
      %v779 = vsub.f32 1.5707964, %v777
      %v780 = vsel %vm778, %v779, %v777
      %vm781 = vcmp.lt.f32.partialorder %v749, 0.0
      %v782 = vsub.f32 3.1415927, %v780
      %v783 = vsel %vm781, %v782, %v780
      %vm784 = vcmp.lt.s32.totalorder %v749, 0
      %v785 = vsel %vm784, 3.1415927, 0.0
      %vm786 = vcmp.eq.f32.partialorder %v712, 0.0
      %v787 = vsel %vm786, %v785, %v783
      %vm788 = vcmp.ne.f32.partialorder %v749, %v749
      %vm789 = vcmp.ne.f32.partialorder %v712, %v712
      %vm790 = vmor %vm788, %vm789
      %v791 = vsel %vm790, nan, %v787
      %vm792 = vcmp.lt.f32.partialorder %v749, 0.0
      %v793 = vsel %vm792, 2.3561945, 0.7853982
      %vm794 = vcmp.eq.s32.totalorder %v754, inf
      %vm795 = vcmp.eq.s32.totalorder %v755, inf
      %vm796 = vmand %vm794, %vm795
      %v797 = vsel %vm796, %v793, %v791
      %v798 = vand.u32 2147483647, %v797
      %v799 = vand.u32 %v712, 2147483648
      %v800 = vor.u32 %v798, %v799
      %v801 = vand.u32 2147483647, %v751
      %v802 = vand.u32 2147483647, %v717
      %v803 = vmin.f32 %v801, %v802
      %v804 = vmax.f32 %v801, %v802
      %v805 = vrcp.pop %v804
      %v806 = vmul.f32 %v803, %v805
      %v807 = vmul.f32 %v806, %v806
      %v808 = vmul.f32 0.002785687, %v807
      %v809 = vadd.f32 %v808, -0.015866
      %v810 = vmul.f32 %v809, %v807
      %v811 = vadd.f32 %v810, 0.04247222
      %v812 = vmul.f32 %v811, %v807
      %v813 = vadd.f32 %v812, -0.074975304
      %v814 = vmul.f32 %v813, %v807
      %v815 = vadd.f32 %v814, 0.1064488
      %v816 = vmul.f32 %v815, %v807
      %v817 = vadd.f32 %v816, -0.14207031
      %v818 = vmul.f32 %v817, %v807
      %v819 = vadd.f32 %v818, 0.19993454
      %v820 = vmul.f32 %v819, %v807
      %v821 = vadd.f32 %v820, -0.33333147
      %v822 = vmul.f32 %v821, %v807
      %v823 = vmul.f32 %v822, %v806
      %v824 = vadd.f32 %v823, %v806
      %vm825 = vcmp.gt.f32.partialorder %v802, %v801
      %v826 = vsub.f32 1.5707964, %v824
      %v827 = vsel %vm825, %v826, %v824
      %vm828 = vcmp.lt.f32.partialorder %v751, 0.0
      %v829 = vsub.f32 3.1415927, %v827
      %v830 = vsel %vm828, %v829, %v827
      %vm831 = vcmp.lt.s32.totalorder %v751, 0
      %v832 = vsel %vm831, 3.1415927, 0.0
      %vm833 = vcmp.eq.f32.partialorder %v717, 0.0
      %v834 = vsel %vm833, %v832, %v830
      %vm835 = vcmp.ne.f32.partialorder %v751, %v751
      %vm836 = vcmp.ne.f32.partialorder %v717, %v717
      %vm837 = vmor %vm835, %vm836
      %v838 = vsel %vm837, nan, %v834
      %vm839 = vcmp.lt.f32.partialorder %v751, 0.0
      %v840 = vsel %vm839, 2.3561945, 0.7853982
      %vm841 = vcmp.eq.s32.totalorder %v801, inf
      %vm842 = vcmp.eq.s32.totalorder %v802, inf
      %vm843 = vmand %vm841, %vm842
      %v844 = vsel %vm843, %v840, %v838
      %v845 = vand.u32 2147483647, %v844
      %v846 = vand.u32 %v717, 2147483648
      %v847 = vor.u32 %v845, %v846
      %v848 = vsel %vm451, %v738, %v800
      %v849 = vsel %vm451, %v745, %v847
      %v850 = vld [vmem:[%s7] sm:$0xff]
      %v851 = vld [vmem:[%s7 + $0x8] sm:$0xff]
      %v852 = vld [vmem:[%s7 + $0x10] sm:$0xff]
      %v853 = vld [vmem:[%s7 + $0x18] sm:$0xff]
      %v854 = vld [vmem:[%s7 + $0x20] sm:$0xff]
      %v855 = vld [vmem:[%s7 + $0x28] sm:$0xff]
      %v856 = vld [vmem:[%s7 + $0x30] sm:$0xff]
      %v857 = vld [vmem:[%s7 + $0x38] sm:$0xff]
      %v858 = vld [vmem:[%s7 + $0x40] sm:$0xff]
      %v859 = vld [vmem:[%s7 + $0x48] sm:$0xff]
      %v860 = vld [vmem:[%s7 + $0x50] sm:$0xff]
      %v861 = vld [vmem:[%s7 + $0x58] sm:$0xff]
      %v862 = vld [vmem:[%s7 + $0x60] sm:$0xff]
      %v863 = vld [vmem:[%s7 + $0x68] sm:$0xff]
      %v864 = vld [vmem:[%s7 + $0x70] sm:$0xff]
      %v865 = vld [vmem:[%s7 + $0x78] sm:$0xff]
      %v866 = vld [vmem:[%s10] sm:$0x1]
      %v868 = vlaneseq
      %v869 = vshrl.u32 %v868, 7
      %v870 = vsub.s32 0, %v869
      %v871 = vrot.slane %v866, %v870
      %873 = vmatprep.subr.mxu0 0.0
      %874 = vmatpush1.msra.mxu0 %v850
      %875 = vmatprep.subr.mxu0 0.0
      %876 = vmatpush1.msra.mxu0 %v851
      %877 = vmatprep.subr.mxu0 0.0
      %878 = vmatpush1.msra.mxu0 %v852
      %879 = vmatprep.subr.mxu0 0.0
      %880 = vmatpush1.msra.mxu0 %v853
      %881 = vmatprep.subr.mxu0 0.0
      %882 = vmatpush1.msra.mxu0 %v854
      %883 = vmatprep.subr.mxu0 0.0
      %884 = vmatpush1.msra.mxu0 %v855
      %885 = vmatprep.subr.mxu0 0.0
      %886 = vmatpush1.msra.mxu0 %v856
      %887 = vmatprep.subr.mxu0 0.0
      %888 = vmatpush1.msra.mxu0 %v857
      %889 = vmatprep.subr.mxu0 0.0
      %890 = vmatpush1.msra.mxu0 %v858
      %891 = vmatprep.subr.mxu0 0.0
      %892 = vmatpush1.msra.mxu0 %v859
      %893 = vmatprep.subr.mxu0 0.0
      %894 = vmatpush1.msra.mxu0 %v860
      %895 = vmatprep.subr.mxu0 0.0
      %896 = vmatpush1.msra.mxu0 %v861
      %897 = vmatprep.subr.mxu0 0.0
      %898 = vmatpush1.msra.mxu0 %v862
      %899 = vmatprep.subr.mxu0 0.0
      %900 = vmatpush1.msra.mxu0 %v863
      %901 = vmatprep.subr.mxu0 0.0
      %902 = vmatpush1.msra.mxu0 %v864
      %903 = vmatprep.subr.mxu0 0.0
      %904 = vmatpush1.msra.mxu0 %v865
      %905 = vmatprep.subr.mxu0 0.0
      %906 = vmatpush1.msra.mxu0 0.0
      %907 = vmatprep.subr.mxu0 0.0
      %908 = vmatpush1.msra.mxu0 0.0
      %909 = vmatprep.subr.mxu0 0.0
      %910 = vmatpush1.msra.mxu0 0.0
      %911 = vmatprep.subr.mxu0 0.0
      %912 = vmatpush1.msra.mxu0 0.0
      %913 = vmatprep.subr.mxu0 0.0
      %914 = vmatpush1.msra.mxu0 0.0
      %915 = vmatprep.subr.mxu0 0.0
      %916 = vmatpush1.msra.mxu0 0.0
      %917 = vmatprep.subr.mxu0 0.0
      %918 = vmatpush1.msra.mxu0 0.0
      %919 = vmatprep.subr.mxu0 0.0
      %920 = vmatpush1.msra.mxu0 0.0
      %921 = vmatprep.subr.mxu0 0.0
      %922 = vmatpush1.msra.mxu0 0.0
      %923 = vmatprep.subr.mxu0 0.0
      %924 = vmatpush1.msra.mxu0 0.0
      %925 = vmatprep.subr.mxu0 0.0
      %926 = vmatpush1.msra.mxu0 0.0
      %927 = vmatprep.subr.mxu0 0.0
      %928 = vmatpush1.msra.mxu0 0.0
      %929 = vmatprep.subr.mxu0 0.0
      %930 = vmatpush1.msra.mxu0 0.0
      %931 = vmatprep.subr.mxu0 0.0
      %932 = vmatpush1.msra.mxu0 0.0
      %933 = vmatprep.subr.mxu0 0.0
      %934 = vmatpush1.msra.mxu0 0.0
      %935 = vmatprep.subr.mxu0 0.0
      %936 = vmatpush1.msra.mxu0 0.0
      %937 = vmatprep.mubr.f32.mxu0 0.0
      %938 = vmatmul.mubr.f32.gmra.mrb[0].mxu0 %v848
      %v939 = vpop.f32.mrb[0].mxu0
      %v940 = vadd.f32 %v871, %v939
      %v941 = vpop.f32.mrb[0].mxu0
      %942 = vmatprep.mubr.f32.mxu0 0.0
      %943 = vmatmul.mubr.f32.gmra.mrb[0].mxu0 %v849
      %v944 = vpop.f32.mrb[0].mxu0
      %v945 = vadd.f32 %v871, %v944
      %v946 = vpop.f32.mrb[0].mxu0
      %947 = vdwg.mxu0
      %vm948 = vcmp.ge.f32.partialorder %v940, 0.0
      %vm949 = vcmp.ge.f32.partialorder %v945, 0.0
      %v950 = vmul.f32 %v940, 0.1
      %v951 = vmul.f32 %v945, 0.1
      %v952 = vsel %vm948, %v940, %v950
      %v953 = vsel %vm949, %v945, %v951
      %v954 = vld [vmem:[%s8] sm:$0xff]
      %v955 = vld [vmem:[%s8 + $0x8] sm:$0xff]
      %v956 = vld [vmem:[%s8 + $0x10] sm:$0xff]
      %v957 = vld [vmem:[%s8 + $0x18] sm:$0xff]
      %v958 = vld [vmem:[%s8 + $0x20] sm:$0xff]
      %v959 = vld [vmem:[%s8 + $0x28] sm:$0xff]
      %v960 = vld [vmem:[%s8 + $0x30] sm:$0xff]
      %v961 = vld [vmem:[%s8 + $0x38] sm:$0xff]
      %v962 = vld [vmem:[%s8 + $0x40] sm:$0xff]
      %v963 = vld [vmem:[%s8 + $0x48] sm:$0xff]
      %v964 = vld [vmem:[%s8 + $0x50] sm:$0xff]
      %v965 = vld [vmem:[%s8 + $0x58] sm:$0xff]
      %v966 = vld [vmem:[%s8 + $0x60] sm:$0xff]
      %v967 = vld [vmem:[%s8 + $0x68] sm:$0xff]
      %v968 = vld [vmem:[%s8 + $0x70] sm:$0xff]
      %v969 = vld [vmem:[%s8 + $0x78] sm:$0xff]
      %v970 = vld [vmem:[%s11] sm:$0x1]
      %v972 = vlaneseq
      %v973 = vshrl.u32 %v972, 7
      %v974 = vsub.s32 0, %v973
      %v975 = vrot.slane %v970, %v974
      %977 = vmatprep.subr.mxu0 0.0
      %978 = vmatpush1.msra.mxu0 %v954
      %979 = vmatprep.subr.mxu0 0.0
      %980 = vmatpush1.msra.mxu0 %v955
      %981 = vmatprep.subr.mxu0 0.0
      %982 = vmatpush1.msra.mxu0 %v956
      %983 = vmatprep.subr.mxu0 0.0
      %984 = vmatpush1.msra.mxu0 %v957
      %985 = vmatprep.subr.mxu0 0.0
      %986 = vmatpush1.msra.mxu0 %v958
      %987 = vmatprep.subr.mxu0 0.0
      %988 = vmatpush1.msra.mxu0 %v959
      %989 = vmatprep.subr.mxu0 0.0
      %990 = vmatpush1.msra.mxu0 %v960
      %991 = vmatprep.subr.mxu0 0.0
      %992 = vmatpush1.msra.mxu0 %v961
      %993 = vmatprep.subr.mxu0 0.0
      %994 = vmatpush1.msra.mxu0 %v962
      %995 = vmatprep.subr.mxu0 0.0
      %996 = vmatpush1.msra.mxu0 %v963
      %997 = vmatprep.subr.mxu0 0.0
      %998 = vmatpush1.msra.mxu0 %v964
      %999 = vmatprep.subr.mxu0 0.0
      %1000 = vmatpush1.msra.mxu0 %v965
      %1001 = vmatprep.subr.mxu0 0.0
      %1002 = vmatpush1.msra.mxu0 %v966
      %1003 = vmatprep.subr.mxu0 0.0
      %1004 = vmatpush1.msra.mxu0 %v967
      %1005 = vmatprep.subr.mxu0 0.0
      %1006 = vmatpush1.msra.mxu0 %v968
      %1007 = vmatprep.subr.mxu0 0.0
      %1008 = vmatpush1.msra.mxu0 %v969
      %1009 = vmatprep.subr.mxu0 0.0
      %1010 = vmatpush1.msra.mxu0 0.0
      %1011 = vmatprep.subr.mxu0 0.0
      %1012 = vmatpush1.msra.mxu0 0.0
      %1013 = vmatprep.subr.mxu0 0.0
      %1014 = vmatpush1.msra.mxu0 0.0
      %1015 = vmatprep.subr.mxu0 0.0
      %1016 = vmatpush1.msra.mxu0 0.0
      %1017 = vmatprep.subr.mxu0 0.0
      %1018 = vmatpush1.msra.mxu0 0.0
      %1019 = vmatprep.subr.mxu0 0.0
      %1020 = vmatpush1.msra.mxu0 0.0
      %1021 = vmatprep.subr.mxu0 0.0
      %1022 = vmatpush1.msra.mxu0 0.0
      %1023 = vmatprep.subr.mxu0 0.0
      %1024 = vmatpush1.msra.mxu0 0.0
      %1025 = vmatprep.subr.mxu0 0.0
      %1026 = vmatpush1.msra.mxu0 0.0
      %1027 = vmatprep.subr.mxu0 0.0
      %1028 = vmatpush1.msra.mxu0 0.0
      %1029 = vmatprep.subr.mxu0 0.0
      %1030 = vmatpush1.msra.mxu0 0.0
      %1031 = vmatprep.subr.mxu0 0.0
      %1032 = vmatpush1.msra.mxu0 0.0
      %1033 = vmatprep.subr.mxu0 0.0
      %1034 = vmatpush1.msra.mxu0 0.0
      %1035 = vmatprep.subr.mxu0 0.0
      %1036 = vmatpush1.msra.mxu0 0.0
      %1037 = vmatprep.subr.mxu0 0.0
      %1038 = vmatpush1.msra.mxu0 0.0
      %1039 = vmatprep.subr.mxu0 0.0
      %1040 = vmatpush1.msra.mxu0 0.0
      %1041 = vmatprep.mubr.f32.mxu0 0.0
      %1042 = vmatmul.mubr.f32.gmra.mrb[0].mxu0 %v952
      %v1043 = vpop.f32.mrb[0].mxu0
      %v1044 = vadd.f32 %v975, %v1043
      %v1045 = vpop.f32.mrb[0].mxu0
      %1046 = vmatprep.mubr.f32.mxu0 0.0
      %1047 = vmatmul.mubr.f32.gmra.mrb[0].mxu0 %v953
      %v1048 = vpop.f32.mrb[0].mxu0
      %v1049 = vadd.f32 %v975, %v1048
      %v1050 = vpop.f32.mrb[0].mxu0
      %1051 = vdwg.mxu0
      %v1052 = vand.u32 2147483647, %v1044
      %vm1053 = vcmp.le.f32.partialorder %v1052, 0.7853982
      %vm1054 = vcmp.lt.s32.totalorder %v1044, 0
      %v1055 = vand.u32 %v1044, 2139095040
      %v1056 = vshrl.u32 %v1055, 23
      %v1057 = vsub.s32 %v1056, 127
      %v1058 = vand.u32 2147483647, %v1044
      %v1059 = vand.u32 %v1058, 8388607
      %v1060 = vor.u32 %v1059, 8388608
      %v1061 = vsub.s32 0, %v1060
      %v1062 = vadd.s32 %v1057, 1
      %vm1063 = vcmp.gt.s32.totalorder %v1062, 0
      %v1064 = vsel %vm1063, %v1062, 0
      %v1065 = vshrl.u32 %v1064, 5
      %v1066 = vand.u32 %v1064, 31
      %v1067 = vsub.s32 32, %v1066
      %v1068 = vshrl.u32 683565275, %v1067
      %v1069 = vshll.u32 683565275, %v1066
      %v1070 = vshrl.u32 2475754826, %v1067
      %v1071 = vor.u32 %v1069, %v1070
      %v1072 = vshll.u32 2475754826, %v1066
      %v1073 = vshrl.u32 2131351028, %v1067
      %v1074 = vor.u32 %v1072, %v1073
      %v1075 = vshll.u32 2131351028, %v1066
      %v1076 = vshrl.u32 2102212464, %v1067
      %v1077 = vor.u32 %v1075, %v1076
      %v1078 = vshll.u32 2102212464, %v1066
      %v1079 = vshrl.u32 920167782, %v1067
      %v1080 = vor.u32 %v1078, %v1079
      %v1081 = vshll.u32 920167782, %v1066
      %v1082 = vshrl.u32 1326507024, %v1067
      %v1083 = vor.u32 %v1081, %v1082
      %vm1084 = vcmp.lt.s32.totalorder %v1065, 1
      %vm1085 = vcmp.lt.s32.totalorder %v1065, 2
      %vm1086 = vcmp.lt.s32.totalorder %v1065, 3
      %vm1087 = vcmp.lt.s32.totalorder %v1065, 4
      %v1088 = vsel %vm1084, %v1068, %v1071
      %v1089 = vsel %vm1087, %v1077, 2102212464
      %v1090 = vsel %vm1086, %v1074, %v1089
      %v1091 = vsel %vm1085, %v1088, %v1090
      %v1092 = vsel %vm1084, %v1071, %v1074
      %v1093 = vsel %vm1087, %v1080, 920167782
      %v1094 = vsel %vm1086, %v1077, %v1093
      %v1095 = vsel %vm1085, %v1092, %v1094
      %v1096 = vsel %vm1084, %v1074, %v1077
      %v1097 = vsel %vm1087, %v1083, 1326507024
      %v1098 = vsel %vm1086, %v1080, %v1097
      %v1099 = vsel %vm1085, %v1096, %v1098
      %v1100 = vshll.u32 %v1060, 8
      %v1101 = vmul.u32.u64.compose %v1100, %v1099
      %v1102 = vextract.low.u32 %v1101
      %v1103 = vextract.high.u32 %v1101
      %v1104 = vmul.u32.u64.compose %v1100, %v1095
      %v1105 = vextract.low.u32 %v1104
      %v1106 = vextract.high.u32 %v1104
      %v1107 = vmul.u32 %v1100, %v1091
      %v1108 = vadd.s32 %v1103, %v1105
      %vm1109 = vc.u32 %v1103, %v1105
      %v1110 = vadd.s32 %v1106, 1
      %v1111 = vsel %vm1109, %v1110, %v1106
      %v1112 = vadd.s32 %v1107, %v1111
      %v1113 = vadd.s32 %v1112, 536870912
      %v1114 = vshrl.u32 %v1113, 30
      %v1115 = vshll.u32 %v1114, 30
      %v1116 = vsub.s32 %v1112, %v1115
      %vm1117 = vcmp.lt.s32.totalorder %v1116, 0
      %v1118 = vsub.s32 0, %v1116
      %v1119 = vsel %vm1117, %v1118, %v1116
      %v1120 = vclz %v1119
      %v1121 = vsub.s32 %v1120, 2
      %vm1122 = vcmp.gt.s32.totalorder 0, %v1121
      %v1123 = vsel %vm1122, 0, %v1121
      %v1124 = vsub.s32 32, %v1123
      %v1125 = vshll.u32 %v1116, %v1123
      %v1126 = vshrl.u32 %v1108, %v1124
      %v1127 = vor.u32 %v1125, %v1126
      %v1128 = vsub.s32 4294967266, %v1123
      %v1129 = vadd.s32 %v1128, 127
      %v1130 = vshll.u32 %v1129, 23
      %v1131 = vor.u32 4788187, %v1130
      %v1132 = vand.u32 2147483647, %v1131
      %v1134 = vcvt.s32.f32 %v1127
      %v1135 = vmul.f32 %v1134, %v1132
      %v1136 = vxor.u32 %v1135, 2147483648
      %v1137 = vsel %vm1054, %v1136, %v1135
      %v1138 = vsub.s32 4, %v1114
      %v1139 = vsel %vm1054, %v1138, %v1114
      %v1140 = vsel %vm1053, %v1044, %v1137
      %v1141 = vsel %vm1053, 0, %v1139
      %v1142 = vcosq.f32.pop %v1140
      %v1143 = vsinq.f32.pop %v1140
      %vm1144 = vweird.f32 %v1044
      %v1145 = vand.u32 %v1141, 3
      %vm1146 = vcmp.lt.s32.totalorder %v1145, 2
      %vm1147 = vcmp.eq.s32.totalorder %v1145, 0
      %v1148 = vxor.u32 %v1143, 2147483648
      %v1149 = vsel %vm1147, %v1142, %v1148
      %vm1150 = vcmp.eq.s32.totalorder %v1145, 2
      %v1151 = vxor.u32 %v1142, 2147483648
      %v1152 = vsel %vm1150, %v1151, %v1143
      %v1153 = vsel %vm1146, %v1149, %v1152
      %v1154 = vsel %vm1144, nan, %v1153
      %v1155 = vand.u32 2147483647, %v1049
      %vm1156 = vcmp.le.f32.partialorder %v1155, 0.7853982
      %vm1157 = vcmp.lt.s32.totalorder %v1049, 0
      %v1158 = vand.u32 %v1049, 2139095040
      %v1159 = vshrl.u32 %v1158, 23
      %v1160 = vsub.s32 %v1159, 127
      %v1161 = vand.u32 2147483647, %v1049
      %v1162 = vand.u32 %v1161, 8388607
      %v1163 = vor.u32 %v1162, 8388608
      %v1164 = vsub.s32 0, %v1163
      %v1165 = vadd.s32 %v1160, 1
      %vm1166 = vcmp.gt.s32.totalorder %v1165, 0
      %v1167 = vsel %vm1166, %v1165, 0
      %v1168 = vshrl.u32 %v1167, 5
      %v1169 = vand.u32 %v1167, 31
      %v1170 = vsub.s32 32, %v1169
      %v1171 = vshrl.u32 683565275, %v1170
      %v1172 = vshll.u32 683565275, %v1169
      %v1173 = vshrl.u32 2475754826, %v1170
      %v1174 = vor.u32 %v1172, %v1173
      %v1175 = vshll.u32 2475754826, %v1169
      %v1176 = vshrl.u32 2131351028, %v1170
      %v1177 = vor.u32 %v1175, %v1176
      %v1178 = vshll.u32 2131351028, %v1169
      %v1179 = vshrl.u32 2102212464, %v1170
      %v1180 = vor.u32 %v1178, %v1179
      %v1181 = vshll.u32 2102212464, %v1169
      %v1182 = vshrl.u32 920167782, %v1170
      %v1183 = vor.u32 %v1181, %v1182
      %v1184 = vshll.u32 920167782, %v1169
      %v1185 = vshrl.u32 1326507024, %v1170
      %v1186 = vor.u32 %v1184, %v1185
      %vm1187 = vcmp.lt.s32.totalorder %v1168, 1
      %vm1188 = vcmp.lt.s32.totalorder %v1168, 2
      %vm1189 = vcmp.lt.s32.totalorder %v1168, 3
      %vm1190 = vcmp.lt.s32.totalorder %v1168, 4
      %v1191 = vsel %vm1187, %v1171, %v1174
      %v1192 = vsel %vm1190, %v1180, 2102212464
      %v1193 = vsel %vm1189, %v1177, %v1192
      %v1194 = vsel %vm1188, %v1191, %v1193
      %v1195 = vsel %vm1187, %v1174, %v1177
      %v1196 = vsel %vm1190, %v1183, 920167782
      %v1197 = vsel %vm1189, %v1180, %v1196
      %v1198 = vsel %vm1188, %v1195, %v1197
      %v1199 = vsel %vm1187, %v1177, %v1180
      %v1200 = vsel %vm1190, %v1186, 1326507024
      %v1201 = vsel %vm1189, %v1183, %v1200
      %v1202 = vsel %vm1188, %v1199, %v1201
      %v1203 = vshll.u32 %v1163, 8
      %v1204 = vmul.u32.u64.compose %v1203, %v1202
      %v1205 = vextract.low.u32 %v1204
      %v1206 = vextract.high.u32 %v1204
      %v1207 = vmul.u32.u64.compose %v1203, %v1198
      %v1208 = vextract.low.u32 %v1207
      %v1209 = vextract.high.u32 %v1207
      %v1210 = vmul.u32 %v1203, %v1194
      %v1211 = vadd.s32 %v1206, %v1208
      %vm1212 = vc.u32 %v1206, %v1208
      %v1213 = vadd.s32 %v1209, 1
      %v1214 = vsel %vm1212, %v1213, %v1209
      %v1215 = vadd.s32 %v1210, %v1214
      %v1216 = vadd.s32 %v1215, 536870912
      %v1217 = vshrl.u32 %v1216, 30
      %v1218 = vshll.u32 %v1217, 30
      %v1219 = vsub.s32 %v1215, %v1218
      %vm1220 = vcmp.lt.s32.totalorder %v1219, 0
      %v1221 = vsub.s32 0, %v1219
      %v1222 = vsel %vm1220, %v1221, %v1219
      %v1223 = vclz %v1222
      %v1224 = vsub.s32 %v1223, 2
      %vm1225 = vcmp.gt.s32.totalorder 0, %v1224
      %v1226 = vsel %vm1225, 0, %v1224
      %v1227 = vsub.s32 32, %v1226
      %v1228 = vshll.u32 %v1219, %v1226
      %v1229 = vshrl.u32 %v1211, %v1227
      %v1230 = vor.u32 %v1228, %v1229
      %v1231 = vsub.s32 4294967266, %v1226
      %v1232 = vadd.s32 %v1231, 127
      %v1233 = vshll.u32 %v1232, 23
      %v1234 = vor.u32 4788187, %v1233
      %v1235 = vand.u32 2147483647, %v1234
      %v1237 = vcvt.s32.f32 %v1230
      %v1238 = vmul.f32 %v1237, %v1235
      %v1239 = vxor.u32 %v1238, 2147483648
      %v1240 = vsel %vm1157, %v1239, %v1238
      %v1241 = vsub.s32 4, %v1217
      %v1242 = vsel %vm1157, %v1241, %v1217
      %v1243 = vsel %vm1156, %v1049, %v1240
      %v1244 = vsel %vm1156, 0, %v1242
      %v1245 = vcosq.f32.pop %v1243
      %v1246 = vsinq.f32.pop %v1243
      %vm1247 = vweird.f32 %v1049
      %v1248 = vand.u32 %v1244, 3
      %vm1249 = vcmp.lt.s32.totalorder %v1248, 2
      %vm1250 = vcmp.eq.s32.totalorder %v1248, 0
      %v1251 = vxor.u32 %v1246, 2147483648
      %v1252 = vsel %vm1250, %v1245, %v1251
      %vm1253 = vcmp.eq.s32.totalorder %v1248, 2
      %v1254 = vxor.u32 %v1245, 2147483648
      %v1255 = vsel %vm1253, %v1254, %v1246
      %v1256 = vsel %vm1249, %v1252, %v1255
      %v1257 = vsel %vm1247, nan, %v1256
      %1260 = vrot.lane.b32.xlu0 %v1154, 64
      %v1261 = vpop.permute.xlu0 %1260
      %1262 = vrot.lane.b32.xlu0 %v1257, 64
      %v1263 = vpop.permute.xlu0 %1262
      %v1266 = vmul.f32 %v1044, %v1261
      %v1267 = vmul.f32 %v1049, %v1263
      %v1268 = vand.u32 2147483647, %v1044
      %vm1269 = vcmp.le.f32.partialorder %v1268, 0.7853982
      %vm1270 = vcmp.lt.s32.totalorder %v1044, 0
      %v1271 = vand.u32 %v1044, 2139095040
      %v1272 = vshrl.u32 %v1271, 23
      %v1273 = vsub.s32 %v1272, 127
      %v1274 = vand.u32 2147483647, %v1044
      %v1275 = vand.u32 %v1274, 8388607
      %v1276 = vor.u32 %v1275, 8388608
      %v1277 = vsub.s32 0, %v1276
      %v1278 = vadd.s32 %v1273, 1
      %vm1279 = vcmp.gt.s32.totalorder %v1278, 0
      %v1280 = vsel %vm1279, %v1278, 0
      %v1281 = vshrl.u32 %v1280, 5
      %v1282 = vand.u32 %v1280, 31
      %v1283 = vsub.s32 32, %v1282
      %v1284 = vshrl.u32 683565275, %v1283
      %v1285 = vshll.u32 683565275, %v1282
      %v1286 = vshrl.u32 2475754826, %v1283
      %v1287 = vor.u32 %v1285, %v1286
      %v1288 = vshll.u32 2475754826, %v1282
      %v1289 = vshrl.u32 2131351028, %v1283
      %v1290 = vor.u32 %v1288, %v1289
      %v1291 = vshll.u32 2131351028, %v1282
      %v1292 = vshrl.u32 2102212464, %v1283
      %v1293 = vor.u32 %v1291, %v1292
      %v1294 = vshll.u32 2102212464, %v1282
      %v1295 = vshrl.u32 920167782, %v1283
      %v1296 = vor.u32 %v1294, %v1295
      %v1297 = vshll.u32 920167782, %v1282
      %v1298 = vshrl.u32 1326507024, %v1283
      %v1299 = vor.u32 %v1297, %v1298
      %vm1300 = vcmp.lt.s32.totalorder %v1281, 1
      %vm1301 = vcmp.lt.s32.totalorder %v1281, 2
      %vm1302 = vcmp.lt.s32.totalorder %v1281, 3
      %vm1303 = vcmp.lt.s32.totalorder %v1281, 4
      %v1304 = vsel %vm1300, %v1284, %v1287
      %v1305 = vsel %vm1303, %v1293, 2102212464
      %v1306 = vsel %vm1302, %v1290, %v1305
      %v1307 = vsel %vm1301, %v1304, %v1306
      %v1308 = vsel %vm1300, %v1287, %v1290
      %v1309 = vsel %vm1303, %v1296, 920167782
      %v1310 = vsel %vm1302, %v1293, %v1309
      %v1311 = vsel %vm1301, %v1308, %v1310
      %v1312 = vsel %vm1300, %v1290, %v1293
      %v1313 = vsel %vm1303, %v1299, 1326507024
      %v1314 = vsel %vm1302, %v1296, %v1313
      %v1315 = vsel %vm1301, %v1312, %v1314
      %v1316 = vshll.u32 %v1276, 8
      %v1317 = vmul.u32.u64.compose %v1316, %v1315
      %v1318 = vextract.low.u32 %v1317
      %v1319 = vextract.high.u32 %v1317
      %v1320 = vmul.u32.u64.compose %v1316, %v1311
      %v1321 = vextract.low.u32 %v1320
      %v1322 = vextract.high.u32 %v1320
      %v1323 = vmul.u32 %v1316, %v1307
      %v1324 = vadd.s32 %v1319, %v1321
      %vm1325 = vc.u32 %v1319, %v1321
      %v1326 = vadd.s32 %v1322, 1
      %v1327 = vsel %vm1325, %v1326, %v1322
      %v1328 = vadd.s32 %v1323, %v1327
      %v1329 = vadd.s32 %v1328, 536870912
      %v1330 = vshrl.u32 %v1329, 30
      %v1331 = vshll.u32 %v1330, 30
      %v1332 = vsub.s32 %v1328, %v1331
      %vm1333 = vcmp.lt.s32.totalorder %v1332, 0
      %v1334 = vsub.s32 0, %v1332
      %v1335 = vsel %vm1333, %v1334, %v1332
      %v1336 = vclz %v1335
      %v1337 = vsub.s32 %v1336, 2
      %vm1338 = vcmp.gt.s32.totalorder 0, %v1337
      %v1339 = vsel %vm1338, 0, %v1337
      %v1340 = vsub.s32 32, %v1339
      %v1341 = vshll.u32 %v1332, %v1339
      %v1342 = vshrl.u32 %v1324, %v1340
      %v1343 = vor.u32 %v1341, %v1342
      %v1344 = vsub.s32 4294967266, %v1339
      %v1345 = vadd.s32 %v1344, 127
      %v1346 = vshll.u32 %v1345, 23
      %v1347 = vor.u32 4788187, %v1346
      %v1348 = vand.u32 2147483647, %v1347
      %v1350 = vcvt.s32.f32 %v1343
      %v1351 = vmul.f32 %v1350, %v1348
      %v1352 = vxor.u32 %v1351, 2147483648
      %v1353 = vsel %vm1270, %v1352, %v1351
      %v1354 = vsub.s32 4, %v1330
      %v1355 = vsel %vm1270, %v1354, %v1330
      %v1356 = vsel %vm1269, %v1044, %v1353
      %v1357 = vsel %vm1269, 0, %v1355
      %v1358 = vcosq.f32.pop %v1356
      %v1359 = vsinq.f32.pop %v1356
      %vm1360 = vweird.f32 %v1044
      %v1361 = vadd.s32 %v1357, 3
      %v1362 = vand.u32 %v1361, 3
      %vm1363 = vcmp.lt.s32.totalorder %v1362, 2
      %vm1364 = vcmp.eq.s32.totalorder %v1362, 0
      %v1365 = vxor.u32 %v1359, 2147483648
      %v1366 = vsel %vm1364, %v1358, %v1365
      %vm1367 = vcmp.eq.s32.totalorder %v1362, 2
      %v1368 = vxor.u32 %v1358, 2147483648
      %v1369 = vsel %vm1367, %v1368, %v1359
      %v1370 = vsel %vm1363, %v1366, %v1369
      %v1371 = vsel %vm1360, nan, %v1370
      %v1372 = vand.u32 2147483647, %v1049
      %vm1373 = vcmp.le.f32.partialorder %v1372, 0.7853982
      %vm1374 = vcmp.lt.s32.totalorder %v1049, 0
      %v1375 = vand.u32 %v1049, 2139095040
      %v1376 = vshrl.u32 %v1375, 23
      %v1377 = vsub.s32 %v1376, 127
      %v1378 = vand.u32 2147483647, %v1049
      %v1379 = vand.u32 %v1378, 8388607
      %v1380 = vor.u32 %v1379, 8388608
      %v1381 = vsub.s32 0, %v1380
      %v1382 = vadd.s32 %v1377, 1
      %vm1383 = vcmp.gt.s32.totalorder %v1382, 0
      %v1384 = vsel %vm1383, %v1382, 0
      %v1385 = vshrl.u32 %v1384, 5
      %v1386 = vand.u32 %v1384, 31
      %v1387 = vsub.s32 32, %v1386
      %v1388 = vshrl.u32 683565275, %v1387
      %v1389 = vshll.u32 683565275, %v1386
      %v1390 = vshrl.u32 2475754826, %v1387
      %v1391 = vor.u32 %v1389, %v1390
      %v1392 = vshll.u32 2475754826, %v1386
      %v1393 = vshrl.u32 2131351028, %v1387
      %v1394 = vor.u32 %v1392, %v1393
      %v1395 = vshll.u32 2131351028, %v1386
      %v1396 = vshrl.u32 2102212464, %v1387
      %v1397 = vor.u32 %v1395, %v1396
      %v1398 = vshll.u32 2102212464, %v1386
      %v1399 = vshrl.u32 920167782, %v1387
      %v1400 = vor.u32 %v1398, %v1399
      %v1401 = vshll.u32 920167782, %v1386
      %v1402 = vshrl.u32 1326507024, %v1387
      %v1403 = vor.u32 %v1401, %v1402
      %vm1404 = vcmp.lt.s32.totalorder %v1385, 1
      %vm1405 = vcmp.lt.s32.totalorder %v1385, 2
      %vm1406 = vcmp.lt.s32.totalorder %v1385, 3
      %vm1407 = vcmp.lt.s32.totalorder %v1385, 4
      %v1408 = vsel %vm1404, %v1388, %v1391
      %v1409 = vsel %vm1407, %v1397, 2102212464
      %v1410 = vsel %vm1406, %v1394, %v1409
      %v1411 = vsel %vm1405, %v1408, %v1410
      %v1412 = vsel %vm1404, %v1391, %v1394
      %v1413 = vsel %vm1407, %v1400, 920167782
      %v1414 = vsel %vm1406, %v1397, %v1413
      %v1415 = vsel %vm1405, %v1412, %v1414
      %v1416 = vsel %vm1404, %v1394, %v1397
      %v1417 = vsel %vm1407, %v1403, 1326507024
      %v1418 = vsel %vm1406, %v1400, %v1417
      %v1419 = vsel %vm1405, %v1416, %v1418
      %v1420 = vshll.u32 %v1380, 8
      %v1421 = vmul.u32.u64.compose %v1420, %v1419
      %v1422 = vextract.low.u32 %v1421
      %v1423 = vextract.high.u32 %v1421
      %v1424 = vmul.u32.u64.compose %v1420, %v1415
      %v1425 = vextract.low.u32 %v1424
      %v1426 = vextract.high.u32 %v1424
      %v1427 = vmul.u32 %v1420, %v1411
      %v1428 = vadd.s32 %v1423, %v1425
      %vm1429 = vc.u32 %v1423, %v1425
      %v1430 = vadd.s32 %v1426, 1
      %v1431 = vsel %vm1429, %v1430, %v1426
      %v1432 = vadd.s32 %v1427, %v1431
      %v1433 = vadd.s32 %v1432, 536870912
      %v1434 = vshrl.u32 %v1433, 30
      %v1435 = vshll.u32 %v1434, 30
      %v1436 = vsub.s32 %v1432, %v1435
      %vm1437 = vcmp.lt.s32.totalorder %v1436, 0
      %v1438 = vsub.s32 0, %v1436
      %v1439 = vsel %vm1437, %v1438, %v1436
      %v1440 = vclz %v1439
      %v1441 = vsub.s32 %v1440, 2
      %vm1442 = vcmp.gt.s32.totalorder 0, %v1441
      %v1443 = vsel %vm1442, 0, %v1441
      %v1444 = vsub.s32 32, %v1443
      %v1445 = vshll.u32 %v1436, %v1443
      %v1446 = vshrl.u32 %v1428, %v1444
      %v1447 = vor.u32 %v1445, %v1446
      %v1448 = vsub.s32 4294967266, %v1443
      %v1449 = vadd.s32 %v1448, 127
      %v1450 = vshll.u32 %v1449, 23
      %v1451 = vor.u32 4788187, %v1450
      %v1452 = vand.u32 2147483647, %v1451
      %v1454 = vcvt.s32.f32 %v1447
      %v1455 = vmul.f32 %v1454, %v1452
      %v1456 = vxor.u32 %v1455, 2147483648
      %v1457 = vsel %vm1374, %v1456, %v1455
      %v1458 = vsub.s32 4, %v1434
      %v1459 = vsel %vm1374, %v1458, %v1434
      %v1460 = vsel %vm1373, %v1049, %v1457
      %v1461 = vsel %vm1373, 0, %v1459
      %v1462 = vcosq.f32.pop %v1460
      %v1463 = vsinq.f32.pop %v1460
      %vm1464 = vweird.f32 %v1049
      %v1465 = vadd.s32 %v1461, 3
      %v1466 = vand.u32 %v1465, 3
      %vm1467 = vcmp.lt.s32.totalorder %v1466, 2
      %vm1468 = vcmp.eq.s32.totalorder %v1466, 0
      %v1469 = vxor.u32 %v1463, 2147483648
      %v1470 = vsel %vm1468, %v1462, %v1469
      %vm1471 = vcmp.eq.s32.totalorder %v1466, 2
      %v1472 = vxor.u32 %v1462, 2147483648
      %v1473 = vsel %vm1471, %v1472, %v1463
      %v1474 = vsel %vm1467, %v1470, %v1473
      %v1475 = vsel %vm1464, nan, %v1474
      %1478 = vrot.lane.b32.xlu0 %v1371, 64
      %v1479 = vpop.permute.xlu0 %1478
      %1480 = vrot.lane.b32.xlu0 %v1475, 64
      %v1481 = vpop.permute.xlu0 %1480
      %v1484 = vmul.f32 %v1044, %v1479
      %v1485 = vmul.f32 %v1049, %v1481
      %1488 = vrot.lane.b32.xlu0 %v1484, 64
      %v1489 = vpop.permute.xlu0 %1488
      %1490 = vrot.lane.b32.xlu0 %v1485, 64
      %v1491 = vpop.permute.xlu0 %1490
      %v1494 = vsel %vm451, %v1266, %v1489
      %v1495 = vsel %vm451, %v1267, %v1491
      %v1496 = vld [vmem:[%s4] sm:$0xff]
      %v1497 = vld [vmem:[%s4 + $0x8] sm:$0xff]
      %v1498 = vld [vmem:[%s4 + $0x10] sm:$0xff]
      %v1499 = vld [vmem:[%s4 + $0x18] sm:$0xff]
      %v1500 = vld [vmem:[%s4 + $0x20] sm:$0xff]
      %v1501 = vld [vmem:[%s4 + $0x28] sm:$0xff]
      %v1502 = vld [vmem:[%s4 + $0x30] sm:$0xff]
      %v1503 = vld [vmem:[%s4 + $0x38] sm:$0xff]
      %v1504 = vld [vmem:[%s4 + $0x40] sm:$0xff]
      %v1505 = vld [vmem:[%s4 + $0x48] sm:$0xff]
      %v1506 = vld [vmem:[%s4 + $0x50] sm:$0xff]
      %v1507 = vld [vmem:[%s4 + $0x58] sm:$0xff]
      %v1508 = vld [vmem:[%s4 + $0x60] sm:$0xff]
      %v1509 = vld [vmem:[%s4 + $0x68] sm:$0xff]
      %v1510 = vld [vmem:[%s4 + $0x70] sm:$0xff]
      %v1511 = vld [vmem:[%s4 + $0x78] sm:$0xff]
      %v1512 = vld [vmem:[%s4 + $0x80] sm:$0xff]
      %v1513 = vld [vmem:[%s4 + $0x88] sm:$0xff]
      %v1514 = vld [vmem:[%s4 + $0x90] sm:$0xff]
      %v1515 = vld [vmem:[%s4 + $0x98] sm:$0xff]
      %v1516 = vld [vmem:[%s4 + $0xa0] sm:$0xff]
      %v1517 = vld [vmem:[%s4 + $0xa8] sm:$0xff]
      %v1518 = vld [vmem:[%s4 + $0xb0] sm:$0xff]
      %v1519 = vld [vmem:[%s4 + $0xb8] sm:$0xff]
      %v1520 = vld [vmem:[%s4 + $0xc0] sm:$0xff]
      %v1521 = vld [vmem:[%s4 + $0xc8] sm:$0xff]
      %v1522 = vld [vmem:[%s4 + $0xd0] sm:$0xff]
      %v1523 = vld [vmem:[%s4 + $0xd8] sm:$0xff]
      %v1524 = vld [vmem:[%s4 + $0xe0] sm:$0xff]
      %v1525 = vld [vmem:[%s4 + $0xe8] sm:$0xff]
      %v1526 = vld [vmem:[%s4 + $0xf0] sm:$0xff]
      %v1527 = vld [vmem:[%s4 + $0xf8] sm:$0xff]
      %1528 = vmatprep.subr.mxu0 %v1497
      %1529 = vmatpush1.msra.mxu0 %v1496
      %1530 = vmatprep.subr.mxu0 %v1499
      %1531 = vmatpush1.msra.mxu0 %v1498
      %1532 = vmatprep.subr.mxu0 %v1501
      %1533 = vmatpush1.msra.mxu0 %v1500
      %1534 = vmatprep.subr.mxu0 %v1503
      %1535 = vmatpush1.msra.mxu0 %v1502
      %1536 = vmatprep.subr.mxu0 %v1505
      %1537 = vmatpush1.msra.mxu0 %v1504
      %1538 = vmatprep.subr.mxu0 %v1507
      %1539 = vmatpush1.msra.mxu0 %v1506
      %1540 = vmatprep.subr.mxu0 %v1509
      %1541 = vmatpush1.msra.mxu0 %v1508
      %1542 = vmatprep.subr.mxu0 %v1511
      %1543 = vmatpush1.msra.mxu0 %v1510
      %1544 = vmatprep.subr.mxu0 %v1513
      %1545 = vmatpush1.msra.mxu0 %v1512
      %1546 = vmatprep.subr.mxu0 %v1515
      %1547 = vmatpush1.msra.mxu0 %v1514
      %1548 = vmatprep.subr.mxu0 %v1517
      %1549 = vmatpush1.msra.mxu0 %v1516
      %1550 = vmatprep.subr.mxu0 %v1519
      %1551 = vmatpush1.msra.mxu0 %v1518
      %1552 = vmatprep.subr.mxu0 %v1521
      %1553 = vmatpush1.msra.mxu0 %v1520
      %1554 = vmatprep.subr.mxu0 %v1523
      %1555 = vmatpush1.msra.mxu0 %v1522
      %1556 = vmatprep.subr.mxu0 %v1525
      %1557 = vmatpush1.msra.mxu0 %v1524
      %1558 = vmatprep.subr.mxu0 %v1527
      %1559 = vmatpush1.msra.mxu0 %v1526
      %1560 = vmatprep.subr.mxu0 0.0
      %1561 = vmatpush1.msra.mxu0 0.0
      %1562 = vmatprep.subr.mxu0 0.0
      %1563 = vmatpush1.msra.mxu0 0.0
      %1564 = vmatprep.subr.mxu0 0.0
      %1565 = vmatpush1.msra.mxu0 0.0
      %1566 = vmatprep.subr.mxu0 0.0
      %1567 = vmatpush1.msra.mxu0 0.0
      %1568 = vmatprep.subr.mxu0 0.0
      %1569 = vmatpush1.msra.mxu0 0.0
      %1570 = vmatprep.subr.mxu0 0.0
      %1571 = vmatpush1.msra.mxu0 0.0
      %1572 = vmatprep.subr.mxu0 0.0
      %1573 = vmatpush1.msra.mxu0 0.0
      %1574 = vmatprep.subr.mxu0 0.0
      %1575 = vmatpush1.msra.mxu0 0.0
      %1576 = vmatprep.subr.mxu0 0.0
      %1577 = vmatpush1.msra.mxu0 0.0
      %1578 = vmatprep.subr.mxu0 0.0
      %1579 = vmatpush1.msra.mxu0 0.0
      %1580 = vmatprep.subr.mxu0 0.0
      %1581 = vmatpush1.msra.mxu0 0.0
      %1582 = vmatprep.subr.mxu0 0.0
      %1583 = vmatpush1.msra.mxu0 0.0
      %1584 = vmatprep.subr.mxu0 0.0
      %1585 = vmatpush1.msra.mxu0 0.0
      %1586 = vmatprep.subr.mxu0 0.0
      %1587 = vmatpush1.msra.mxu0 0.0
      %1588 = vmatprep.subr.mxu0 0.0
      %1589 = vmatpush1.msra.mxu0 0.0
      %1590 = vmatprep.subr.mxu0 0.0
      %1591 = vmatpush1.msra.mxu0 0.0
      %1592 = vmatprep.mubr.f32.mxu0 0.0
      %1593 = vmatmul.mubr.f32.gmra.mrb[0].mxu0 %v1494
      %v1594 = vpop.f32.mrb[0].mxu0
      %v1595 = vadd.f32 0.0, %v1594
      %v1596 = vpop.f32.mrb[0].mxu0
      %v1597 = vadd.f32 0.0, %v1596
      %1598 = vmatprep.mubr.f32.mxu0 0.0
      %1599 = vmatmul.mubr.f32.gmra.mrb[0].mxu0 %v1495
      %v1600 = vpop.f32.mrb[0].mxu0
      %v1601 = vadd.f32 0.0, %v1600
      %v1602 = vpop.f32.mrb[0].mxu0
      %v1603 = vadd.f32 0.0, %v1602
      %1604 = vdwg.mxu0
      %v1605 = vld [vmem:[%s5] sm:$0xff]
      %v1606 = vld [vmem:[%s5 + $0x8] sm:$0xff]
      %v1607 = vld [vmem:[%s5 + $0x10] sm:$0xff]
      %v1608 = vld [vmem:[%s5 + $0x18] sm:$0xff]
      %v1609 = vld [vmem:[%s6] sm:$0xff]
      %v1610 = vld [vmem:[%s6 + $0x8] sm:$0xff]
      %v1611 = vld [vmem:[%s6 + $0x10] sm:$0xff]
      %v1612 = vld [vmem:[%s6 + $0x18] sm:$0xff]
      %v1613 = vsub.f32 0.0, %v1597
      %v1614 = vsub.f32 0.0, %v1603
      %v1616 = vsel %vm557, %v1609, 0
      %v1619 = vsel %vm557, %v1610, 0
      %v1622 = vsel %vm557, %v1611, 0
      %v1625 = vsel %vm557, %v1612, 0
      %1627 = vmatprep.subr.mxu0 %v1595
      %1628 = vmatpush1.msra.mxu0 %v1613
      %1629 = vmatprep.subr.mxu0 %v1601
      %1630 = vmatpush1.msra.mxu0 %v1614
      %1631 = vmatprep.subr.mxu0 0.0
      %1632 = vmatpush1.msra.mxu0 0.0
      %1633 = vmatprep.subr.mxu0 0.0
      %1634 = vmatpush1.msra.mxu0 0.0
      %1635 = vmatprep.subr.mxu0 0.0
      %1636 = vmatpush1.msra.mxu0 0.0
      %1637 = vmatprep.subr.mxu0 0.0
      %1638 = vmatpush1.msra.mxu0 0.0
      %1639 = vmatprep.subr.mxu0 0.0
      %1640 = vmatpush1.msra.mxu0 0.0
      %1641 = vmatprep.subr.mxu0 0.0
      %1642 = vmatpush1.msra.mxu0 0.0
      %1643 = vmatprep.subr.mxu0 0.0
      %1644 = vmatpush1.msra.mxu0 0.0
      %1645 = vmatprep.subr.mxu0 0.0
      %1646 = vmatpush1.msra.mxu0 0.0
      %1647 = vmatprep.subr.mxu0 0.0
      %1648 = vmatpush1.msra.mxu0 0.0
      %1649 = vmatprep.subr.mxu0 0.0
      %1650 = vmatpush1.msra.mxu0 0.0
      %1651 = vmatprep.subr.mxu0 0.0
      %1652 = vmatpush1.msra.mxu0 0.0
      %1653 = vmatprep.subr.mxu0 0.0
      %1654 = vmatpush1.msra.mxu0 0.0
      %1655 = vmatprep.subr.mxu0 0.0
      %1656 = vmatpush1.msra.mxu0 0.0
      %1657 = vmatprep.subr.mxu0 0.0
      %1658 = vmatpush1.msra.mxu0 0.0
      %1659 = vmatprep.subr.mxu0 0.0
      %1660 = vmatpush1.msra.mxu0 0.0
      %1661 = vmatprep.subr.mxu0 0.0
      %1662 = vmatpush1.msra.mxu0 0.0
      %1663 = vmatprep.subr.mxu0 0.0
      %1664 = vmatpush1.msra.mxu0 0.0
      %1665 = vmatprep.subr.mxu0 0.0
      %1666 = vmatpush1.msra.mxu0 0.0
      %1667 = vmatprep.subr.mxu0 0.0
      %1668 = vmatpush1.msra.mxu0 0.0
      %1669 = vmatprep.subr.mxu0 0.0
      %1670 = vmatpush1.msra.mxu0 0.0
      %1671 = vmatprep.subr.mxu0 0.0
      %1672 = vmatpush1.msra.mxu0 0.0
      %1673 = vmatprep.subr.mxu0 0.0
      %1674 = vmatpush1.msra.mxu0 0.0
      %1675 = vmatprep.subr.mxu0 0.0
      %1676 = vmatpush1.msra.mxu0 0.0
      %1677 = vmatprep.subr.mxu0 0.0
      %1678 = vmatpush1.msra.mxu0 0.0
      %1679 = vmatprep.subr.mxu0 0.0
      %1680 = vmatpush1.msra.mxu0 0.0
      %1681 = vmatprep.subr.mxu0 0.0
      %1682 = vmatpush1.msra.mxu0 0.0
      %1683 = vmatprep.subr.mxu0 0.0
      %1684 = vmatpush1.msra.mxu0 0.0
      %1685 = vmatprep.subr.mxu0 0.0
      %1686 = vmatpush1.msra.mxu0 0.0
      %1687 = vmatprep.subr.mxu0 0.0
      %1688 = vmatpush1.msra.mxu0 0.0
      %1689 = vmatprep.subr.mxu0 0.0
      %1690 = vmatpush1.msra.mxu0 0.0
      %1691 = vmatprep.mubr.f32.mxu0 0.0
      %1692 = vmatmul.mubr.f32.gmra.mrb[0].mxu0 %v1616
      %v1693 = vpop.f32.mrb[0].mxu0
      %v1694 = vadd.f32 0.0, %v1693
      %v1695 = vpop.f32.mrb[0].mxu0
      %v1696 = vadd.f32 0.0, %v1695
      %1697 = vmatprep.mubr.f32.mxu0 0.0
      %1698 = vmatmul.mubr.f32.gmra.mrb[0].mxu0 %v1619
      %v1699 = vpop.f32.mrb[0].mxu0
      %v1700 = vadd.f32 0.0, %v1699
      %v1701 = vpop.f32.mrb[0].mxu0
      %v1702 = vadd.f32 0.0, %v1701
      %1703 = vmatprep.mubr.f32.mxu0 0.0
      %1704 = vmatmul.mubr.f32.gmra.mrb[0].mxu0 %v1622
      %v1705 = vpop.f32.mrb[0].mxu0
      %v1706 = vadd.f32 0.0, %v1705
      %v1707 = vpop.f32.mrb[0].mxu0
      %v1708 = vadd.f32 0.0, %v1707
      %1709 = vmatprep.mubr.f32.mxu0 0.0
      %1710 = vmatmul.mubr.f32.gmra.mrb[0].mxu0 %v1625
      %v1711 = vpop.f32.mrb[0].mxu0
      %v1712 = vadd.f32 0.0, %v1711
      %v1713 = vpop.f32.mrb[0].mxu0
      %v1714 = vadd.f32 0.0, %v1713
      %1715 = vdwg.mxu0
      %v1717 = vsel %vm557, %v1605, 0
      %v1720 = vsel %vm557, %v1606, 0
      %v1723 = vsel %vm557, %v1607, 0
      %v1726 = vsel %vm557, %v1608, 0
      %1728 = vmatprep.subr.mxu0 %v1597
      %1729 = vmatpush1.msra.mxu0 %v1595
      %1730 = vmatprep.subr.mxu0 %v1603
      %1731 = vmatpush1.msra.mxu0 %v1601
      %1732 = vmatprep.subr.mxu0 0.0
      %1733 = vmatpush1.msra.mxu0 0.0
      %1734 = vmatprep.subr.mxu0 0.0
      %1735 = vmatpush1.msra.mxu0 0.0
      %1736 = vmatprep.subr.mxu0 0.0
      %1737 = vmatpush1.msra.mxu0 0.0
      %1738 = vmatprep.subr.mxu0 0.0
      %1739 = vmatpush1.msra.mxu0 0.0
      %1740 = vmatprep.subr.mxu0 0.0
      %1741 = vmatpush1.msra.mxu0 0.0
      %1742 = vmatprep.subr.mxu0 0.0
      %1743 = vmatpush1.msra.mxu0 0.0
      %1744 = vmatprep.subr.mxu0 0.0
      %1745 = vmatpush1.msra.mxu0 0.0
      %1746 = vmatprep.subr.mxu0 0.0
      %1747 = vmatpush1.msra.mxu0 0.0
      %1748 = vmatprep.subr.mxu0 0.0
      %1749 = vmatpush1.msra.mxu0 0.0
      %1750 = vmatprep.subr.mxu0 0.0
      %1751 = vmatpush1.msra.mxu0 0.0
      %1752 = vmatprep.subr.mxu0 0.0
      %1753 = vmatpush1.msra.mxu0 0.0
      %1754 = vmatprep.subr.mxu0 0.0
      %1755 = vmatpush1.msra.mxu0 0.0
      %1756 = vmatprep.subr.mxu0 0.0
      %1757 = vmatpush1.msra.mxu0 0.0
      %1758 = vmatprep.subr.mxu0 0.0
      %1759 = vmatpush1.msra.mxu0 0.0
      %1760 = vmatprep.subr.mxu0 0.0
      %1761 = vmatpush1.msra.mxu0 0.0
      %1762 = vmatprep.subr.mxu0 0.0
      %1763 = vmatpush1.msra.mxu0 0.0
      %1764 = vmatprep.subr.mxu0 0.0
      %1765 = vmatpush1.msra.mxu0 0.0
      %1766 = vmatprep.subr.mxu0 0.0
      %1767 = vmatpush1.msra.mxu0 0.0
      %1768 = vmatprep.subr.mxu0 0.0
      %1769 = vmatpush1.msra.mxu0 0.0
      %1770 = vmatprep.subr.mxu0 0.0
      %1771 = vmatpush1.msra.mxu0 0.0
      %1772 = vmatprep.subr.mxu0 0.0
      %1773 = vmatpush1.msra.mxu0 0.0
      %1774 = vmatprep.subr.mxu0 0.0
      %1775 = vmatpush1.msra.mxu0 0.0
      %1776 = vmatprep.subr.mxu0 0.0
      %1777 = vmatpush1.msra.mxu0 0.0
      %1778 = vmatprep.subr.mxu0 0.0
      %1779 = vmatpush1.msra.mxu0 0.0
      %1780 = vmatprep.subr.mxu0 0.0
      %1781 = vmatpush1.msra.mxu0 0.0
      %1782 = vmatprep.subr.mxu0 0.0
      %1783 = vmatpush1.msra.mxu0 0.0
      %1784 = vmatprep.subr.mxu0 0.0
      %1785 = vmatpush1.msra.mxu0 0.0
      %1786 = vmatprep.subr.mxu0 0.0
      %1787 = vmatpush1.msra.mxu0 0.0
      %1788 = vmatprep.subr.mxu0 0.0
      %1789 = vmatpush1.msra.mxu0 0.0
      %1790 = vmatprep.subr.mxu0 0.0
      %1791 = vmatpush1.msra.mxu0 0.0
      %1792 = vmatprep.mubr.f32.mxu0 0.0
      %1793 = vmatmul.mubr.f32.gmra.mrb[0].mxu0 %v1717
      %v1794 = vpop.f32.mrb[0].mxu0
      %v1795 = vadd.f32 %v1694, %v1794
      %v1796 = vpop.f32.mrb[0].mxu0
      %v1797 = vadd.f32 %v1696, %v1796
      %1798 = vmatprep.mubr.f32.mxu0 0.0
      %1799 = vmatmul.mubr.f32.gmra.mrb[0].mxu0 %v1720
      %v1800 = vpop.f32.mrb[0].mxu0
      %v1801 = vadd.f32 %v1700, %v1800
      %v1802 = vpop.f32.mrb[0].mxu0
      %v1803 = vadd.f32 %v1702, %v1802
      %1804 = vmatprep.mubr.f32.mxu0 0.0
      %1805 = vmatmul.mubr.f32.gmra.mrb[0].mxu0 %v1723
      %v1806 = vpop.f32.mrb[0].mxu0
      %v1807 = vadd.f32 %v1706, %v1806
      %v1808 = vpop.f32.mrb[0].mxu0
      %v1809 = vadd.f32 %v1708, %v1808
      %1810 = vmatprep.mubr.f32.mxu0 0.0
      %1811 = vmatmul.mubr.f32.gmra.mrb[0].mxu0 %v1726
      %v1812 = vpop.f32.mrb[0].mxu0
      %v1813 = vadd.f32 %v1712, %v1812
      %v1814 = vpop.f32.mrb[0].mxu0
      %v1815 = vadd.f32 %v1714, %v1814
      %1816 = vdwg.mxu0
      %v1817 = vmul.f32 %v1795, %v1795
      %v1818 = vmul.f32 %v1801, %v1801
      %v1819 = vmul.f32 %v1807, %v1807
      %v1820 = vmul.f32 %v1813, %v1813
      %v1821 = vmul.f32 %v1797, %v1797
      %v1822 = vmul.f32 %v1803, %v1803
      %v1823 = vmul.f32 %v1809, %v1809
      %v1824 = vmul.f32 %v1815, %v1815
      %v1825 = vadd.f32 %v1817, %v1821
      %v1826 = vadd.f32 %v1818, %v1822
      %v1827 = vadd.f32 %v1819, %v1823
      %v1828 = vadd.f32 %v1820, %v1824
      %v1829 = vrsqrt.pop %v1825
      %v1830 = vmul.f32 %v1825, %v1829
      %vm1831 = vcmp.eq.f32.partialorder %v1825, inf
      %v1832 = vsel %vm1831, %v1825, %v1830
      %vm1833 = vcmp.eq.f32.partialorder %v1825, 0.0
      %v1834 = vand.u32 %v1825, 2147483648
      %v1835 = vsel %vm1833, %v1834, %v1832
      %v1836 = vrsqrt.pop %v1826
      %v1837 = vmul.f32 %v1826, %v1836
      %vm1838 = vcmp.eq.f32.partialorder %v1826, inf
      %v1839 = vsel %vm1838, %v1826, %v1837
      %vm1840 = vcmp.eq.f32.partialorder %v1826, 0.0
      %v1841 = vand.u32 %v1826, 2147483648
      %v1842 = vsel %vm1840, %v1841, %v1839
      %v1843 = vrsqrt.pop %v1827
      %v1844 = vmul.f32 %v1827, %v1843
      %vm1845 = vcmp.eq.f32.partialorder %v1827, inf
      %v1846 = vsel %vm1845, %v1827, %v1844
      %vm1847 = vcmp.eq.f32.partialorder %v1827, 0.0
      %v1848 = vand.u32 %v1827, 2147483648
      %v1849 = vsel %vm1847, %v1848, %v1846
      %v1850 = vrsqrt.pop %v1828
      %v1851 = vmul.f32 %v1828, %v1850
      %vm1852 = vcmp.eq.f32.partialorder %v1828, inf
      %v1853 = vsel %vm1852, %v1828, %v1851
      %vm1854 = vcmp.eq.f32.partialorder %v1828, 0.0
      %v1855 = vand.u32 %v1828, 2147483648
      %v1856 = vsel %vm1854, %v1855, %v1853
      %v1857 = vld [vmem:[%s9] sm:$0xff]
      %v1858 = vld [vmem:[%s9 + $0x8] sm:$0xff]
      %v1859 = vld [vmem:[%s9 + $0x10] sm:$0xff]
      %v1860 = vld [vmem:[%s9 + $0x18] sm:$0xff]
      %v1861 = vld [vmem:[%s9 + $0x20] sm:$0xff]
      %v1862 = vld [vmem:[%s9 + $0x28] sm:$0xff]
      %v1863 = vld [vmem:[%s9 + $0x30] sm:$0xff]
      %v1864 = vld [vmem:[%s9 + $0x38] sm:$0xff]
      %v1865 = vld [vmem:[%s9 + $0x40] sm:$0xff]
      %v1866 = vld [vmem:[%s9 + $0x48] sm:$0xff]
      %v1867 = vld [vmem:[%s9 + $0x50] sm:$0xff]
      %v1868 = vld [vmem:[%s9 + $0x58] sm:$0xff]
      %v1869 = vld [vmem:[%s9 + $0x60] sm:$0xff]
      %v1870 = vld [vmem:[%s9 + $0x68] sm:$0xff]
      %v1871 = vld [vmem:[%s9 + $0x70] sm:$0xff]
      %v1872 = vld [vmem:[%s9 + $0x78] sm:$0xff]
      %v1873 = vld [vmem:[%s12] sm:$0x1]
      %v1875 = vlaneseq
      %v1876 = vshrl.u32 %v1875, 7
      %v1877 = vsub.s32 0, %v1876
      %v1878 = vrot.slane %v1873, %v1877
      %1880 = vmatprep.subr.mxu0 0.0
      %1881 = vmatpush1.msra.mxu0 %v1857
      %1882 = vmatprep.subr.mxu0 0.0
      %1883 = vmatpush1.msra.mxu0 %v1858
      %1884 = vmatprep.subr.mxu0 0.0
      %1885 = vmatpush1.msra.mxu0 %v1859
      %1886 = vmatprep.subr.mxu0 0.0
      %1887 = vmatpush1.msra.mxu0 %v1860
      %1888 = vmatprep.subr.mxu0 0.0
      %1889 = vmatpush1.msra.mxu0 %v1861
      %1890 = vmatprep.subr.mxu0 0.0
      %1891 = vmatpush1.msra.mxu0 %v1862
      %1892 = vmatprep.subr.mxu0 0.0
      %1893 = vmatpush1.msra.mxu0 %v1863
      %1894 = vmatprep.subr.mxu0 0.0
      %1895 = vmatpush1.msra.mxu0 %v1864
      %1896 = vmatprep.subr.mxu0 0.0
      %1897 = vmatpush1.msra.mxu0 %v1865
      %1898 = vmatprep.subr.mxu0 0.0
      %1899 = vmatpush1.msra.mxu0 %v1866
      %1900 = vmatprep.subr.mxu0 0.0
      %1901 = vmatpush1.msra.mxu0 %v1867
      %1902 = vmatprep.subr.mxu0 0.0
      %1903 = vmatpush1.msra.mxu0 %v1868
      %1904 = vmatprep.subr.mxu0 0.0
      %1905 = vmatpush1.msra.mxu0 %v1869
      %1906 = vmatprep.subr.mxu0 0.0
      %1907 = vmatpush1.msra.mxu0 %v1870
      %1908 = vmatprep.subr.mxu0 0.0
      %1909 = vmatpush1.msra.mxu0 %v1871
      %1910 = vmatprep.subr.mxu0 0.0
      %1911 = vmatpush1.msra.mxu0 %v1872
      %1912 = vmatprep.subr.mxu0 0.0
      %1913 = vmatpush1.msra.mxu0 0.0
      %1914 = vmatprep.subr.mxu0 0.0
      %1915 = vmatpush1.msra.mxu0 0.0
      %1916 = vmatprep.subr.mxu0 0.0
      %1917 = vmatpush1.msra.mxu0 0.0
      %1918 = vmatprep.subr.mxu0 0.0
      %1919 = vmatpush1.msra.mxu0 0.0
      %1920 = vmatprep.subr.mxu0 0.0
      %1921 = vmatpush1.msra.mxu0 0.0
      %1922 = vmatprep.subr.mxu0 0.0
      %1923 = vmatpush1.msra.mxu0 0.0
      %1924 = vmatprep.subr.mxu0 0.0
      %1925 = vmatpush1.msra.mxu0 0.0
      %1926 = vmatprep.subr.mxu0 0.0
      %1927 = vmatpush1.msra.mxu0 0.0
      %1928 = vmatprep.subr.mxu0 0.0
      %1929 = vmatpush1.msra.mxu0 0.0
      %1930 = vmatprep.subr.mxu0 0.0
      %1931 = vmatpush1.msra.mxu0 0.0
      %1932 = vmatprep.subr.mxu0 0.0
      %1933 = vmatpush1.msra.mxu0 0.0
      %1934 = vmatprep.subr.mxu0 0.0
      %1935 = vmatpush1.msra.mxu0 0.0
      %1936 = vmatprep.subr.mxu0 0.0
      %1937 = vmatpush1.msra.mxu0 0.0
      %1938 = vmatprep.subr.mxu0 0.0
      %1939 = vmatpush1.msra.mxu0 0.0
      %1940 = vmatprep.subr.mxu0 0.0
      %1941 = vmatpush1.msra.mxu0 0.0
      %1942 = vmatprep.subr.mxu0 0.0
      %1943 = vmatpush1.msra.mxu0 0.0
      %1944 = vmatprep.mubr.f32.mxu0 0.0
      %1945 = vmatmul.mubr.f32.gmra.mrb[0].mxu0 %v1835
      %v1946 = vpop.f32.mrb[0].mxu0
      %v1947 = vadd.f32 %v1878, %v1946
      %v1948 = vpop.f32.mrb[0].mxu0
      %1949 = vmatprep.mubr.f32.mxu0 0.0
      %1950 = vmatmul.mubr.f32.gmra.mrb[0].mxu0 %v1842
      %v1951 = vpop.f32.mrb[0].mxu0
      %v1952 = vadd.f32 %v1878, %v1951
      %v1953 = vpop.f32.mrb[0].mxu0
      %1954 = vmatprep.mubr.f32.mxu0 0.0
      %1955 = vmatmul.mubr.f32.gmra.mrb[0].mxu0 %v1849
      %v1956 = vpop.f32.mrb[0].mxu0
      %v1957 = vadd.f32 %v1878, %v1956
      %v1958 = vpop.f32.mrb[0].mxu0
      %1959 = vmatprep.mubr.f32.mxu0 0.0
      %1960 = vmatmul.mubr.f32.gmra.mrb[0].mxu0 %v1856
      %v1961 = vpop.f32.mrb[0].mxu0
      %v1962 = vadd.f32 %v1878, %v1961
      %v1963 = vpop.f32.mrb[0].mxu0
      %1964 = vdwg.mxu0
      %1965 = vst [vmem:[%s440] sm:$0xff] %v1947
      %1966 = vst [vmem:[%s440 + $0x8] sm:$0xff] %v1952
      %1967 = vst [vmem:[%s440 + $0x10] sm:$0xff] %v1957
      %1968 = vst [vmem:[%s440 + $0x18] sm:$0xff] %v1962
      %p1969 = scmp.lt.s32.totalorder %s24, 1
      %s1970 = scalar_select %p1969, %s24, 1
      %s1971 = smul.addr %s1970, 4
      %s1972 = smul.addr %s1971, 8
      %s1973 = scalar_lea.vmem %s13, %s1972
      // Predicated region
      $region73: #{freup_areadinterpolation.1} parent=71 // pred_check
        %p1974 = pneg %p320
      $region74: #{freup_areadinterpolation.1} parent=71 // pred_check_branch
        %1976 = sbr.rel (%p1974) target = $region76
      $region75: #{freup_areadinterpolation.1} parent=71 // pred_region
        _
      $region76: #{freup_areadinterpolation.1} parent=71 // pred_fallthru
        _
    $region72: #{freup_areadinterpolation.1} parent=5 // pred_fallthru
      _
    %p1977 = scmp.le.s32.totalorder 2, %s19
    // Predicated region
    $region77: #{freup_areadinterpolation.1} parent=5 // pred_check
      %p1978 = pneg %p1977
    $region78: #{freup_areadinterpolation.1} parent=5 // pred_check_branch
      %1980 = sbr.rel (%p1978) target = $region80
    $region79: #{freup_areadinterpolation.1} parent=5 // pred_region
      %s1981 = ssub.s32 %s19, 2
      // Predicated region
      $region81: #{freup_areadinterpolation.1} parent=79 // pred_check
        %p1982 = pneg %p326
      $region82: #{freup_areadinterpolation.1} parent=79 // pred_check_branch
        %1984 = sbr.rel (%p1982) target = $region84
      $region83: #{freup_areadinterpolation.1} parent=79 // pred_region
        %p1985 = scmp.lt.s32.totalorder %s25, 1
        %s1986 = scalar_select %p1985, %s25, 1
        %s1987 = smul.addr %s1986, 4
        %s1988 = smul.addr %s1987, 8
        %s1989 = scalar_lea.vmem %s13, %s1988
      $region84: #{freup_areadinterpolation.1} parent=79 // pred_fallthru
        _
    $region80: #{freup_areadinterpolation.1} parent=5 // pred_fallthru
      _
  $region6: #{freup_areadinterpolation.1} parent=0 // loop_footer
    %s23 = sadd.s32 1, %s19
  $region7: #{freup_areadinterpolation.1} parent=0 // loop_footer_branch
    %18 = sbr.rel target = $region3
  $region8: #{freup_areadinterpolation.1} parent=0 // loop_exit
    _

</llo_original>
